<compile_context>
chip_gen: v5e
topology: v5e:2x2
jax: 0.10.0
libtpu: 0.0.40
codegen_flags: <defaults>
</compile_context>

<pallas_src>
import functools

import jax
import jax.numpy as jnp
from jax.experimental import pallas as pl
from jax.experimental.pallas import tpu as pltpu


def _round_up(x, m):
    return ((x + m - 1) // m) * m


def gru_kernel(x_ref, wi_ref, wh_ref, bi_ref, bhn_ref, out_ref, hN_ref,
               *, T, Bp, Hp):
    """x: (T*Bp, Ip)   wi: (Ip, 3*Hp)   wh: (Hp, 3*Hp)
    bi: (1, 3*Hp) = [bir+bhr | biz+bhz | bin] (one 128-lane slab per gate)
    bhn: (1, Hp)   out: (T*Bp, Hp)   hN: (Bp, Hp)

    Padded rows/lanes carry zeros everywhere (zero weight rows/cols, zero
    biases), so the padded part of h never contaminates the valid part."""

    # ---- Phase 1: input projections for every timestep, one MXU pass.
    gi_all = jnp.dot(x_ref[...], wi_ref[...],
                     preferred_element_type=jnp.float32) + bi_ref[...]   # (T*Bp, 3*Hp)

    wh = wh_ref[...]                                                     # (Hp, 3*Hp)
    bhn_b = jnp.broadcast_to(bhn_ref[...], (Bp, Hp))                     # hoisted

    # ---- Phase 2: serial recurrence; only h @ W_h on the critical path.
    h = jnp.zeros((Bp, Hp), jnp.float32)
    for t in range(T):                       # T is static & small -> unrolled
        gi = gi_all[t * Bp:(t + 1) * Bp, :]                              # aligned (8, 3*128)
        gh = jnp.dot(h, wh, preferred_element_type=jnp.float32)          # (Bp, 3*Hp)
        # Gate slices start at lane offsets 0 / Hp / 2*Hp (128-lane aligned).
        r = jax.nn.sigmoid(gi[:, 0:Hp] + gh[:, 0:Hp])
        z = jax.nn.sigmoid(gi[:, Hp:2 * Hp] + gh[:, Hp:2 * Hp])
        n = jnp.tanh(gi[:, 2 * Hp:] + r * (gh[:, 2 * Hp:] + bhn_b))
        h = (1.0 - z) * n + z * h
        # Full-tile, lane-dense VMEM store; single HBM writeback at kernel end.
        out_ref[pl.ds(t * Bp, Bp), :] = h.astype(out_ref.dtype)

    hN_ref[...] = h.astype(hN_ref.dtype)     # final hidden written exactly once


def encoder_rnn_forward(x, params):
    """x: (T, B, I) float32.  Returns (output (T,B,H), hidden (1,B,H))."""
    T, B, I = x.shape
    H = params["whr"].shape[0]

    Bp = _round_up(B, 8)                 # one sublane group per timestep
    Hp = _round_up(max(H, 128), 128)     # one 128-lane slab per gate
    Ip = _round_up(max(I, 128), 128)     # lane-aligned contraction dim

    def pad2(w, rows, cols):
        return jnp.zeros((rows, cols), w.dtype).at[:w.shape[0], :w.shape[1]].set(w)

    # One-time parameter packing / bias folding into gate-aligned slabs.
    w_i = jnp.concatenate([pad2(params["wir"], Ip, Hp),
                           pad2(params["wiz"], Ip, Hp),
                           pad2(params["win"], Ip, Hp)], axis=1)          # (Ip, 3*Hp)
    w_h = jnp.concatenate([pad2(params["whr"], Hp, Hp),
                           pad2(params["whz"], Hp, Hp),
                           pad2(params["whn"], Hp, Hp)], axis=1)          # (Hp, 3*Hp)
    b_i = jnp.concatenate([pad2(params["bir"] + params["bhr"], 1, Hp),
                           pad2(params["biz"] + params["bhz"], 1, Hp),
                           pad2(params["bin"], 1, Hp)], axis=1)           # (1, 3*Hp)
    b_hn = pad2(params["bhn"], 1, Hp)                                     # (1, Hp)

    # Pad batch to a full sublane group and input to a full lane tile.
    x_p = jnp.pad(x, ((0, 0), (0, Bp - B), (0, Ip - I))).reshape(T * Bp, Ip)

    kernel = functools.partial(gru_kernel, T=T, Bp=Bp, Hp=Hp)

    out2d, hN = pl.pallas_call(
        kernel,
        out_shape=(jax.ShapeDtypeStruct((T * Bp, Hp), x.dtype),
                   jax.ShapeDtypeStruct((Bp, Hp), x.dtype)),
        grid=(1,),
        in_specs=[pl.BlockSpec((T * Bp, Ip), lambda i: (0, 0)),
                  pl.BlockSpec((Ip, 3 * Hp), lambda i: (0, 0)),
                  pl.BlockSpec((Hp, 3 * Hp), lambda i: (0, 0)),
                  pl.BlockSpec((1, 3 * Hp), lambda i: (0, 0)),
                  pl.BlockSpec((1, Hp), lambda i: (0, 0))],
        out_specs=(pl.BlockSpec((T * Bp, Hp), lambda i: (0, 0)),
                   pl.BlockSpec((Bp, Hp), lambda i: (0, 0))),
        compiler_params=pltpu.CompilerParams(
            dimension_semantics=("arbitrary",)),
    )(x_p, w_i, w_h, b_i, b_hn)

    # Strip padding before returning anything.
    output = out2d.reshape(T, Bp, Hp)[:, :B, :H]
    hidden = hN[None, :B, :H]
    return output, hidden


def init_params(key, input_size, hidden_size):
    """Deterministic init matching nn.GRU's uniform(-1/sqrt(H), 1/sqrt(H)).
    Weights stored pre-transposed as (in_dim, hidden); biases as (1, hidden)."""
    k = 1.0 / jnp.sqrt(jnp.float32(hidden_size))
    names_shapes = {
        "wir": (input_size, hidden_size), "wiz": (input_size, hidden_size),
        "win": (input_size, hidden_size),
        "whr": (hidden_size, hidden_size), "whz": (hidden_size, hidden_size),
        "whn": (hidden_size, hidden_size),
        "bir": (1, hidden_size), "biz": (1, hidden_size), "bin": (1, hidden_size),
        "bhr": (1, hidden_size), "bhz": (1, hidden_size), "bhn": (1, hidden_size),
    }
    params = {}
    keys = jax.random.split(key, len(names_shapes))
    for kk, (name, shape) in zip(keys, sorted(names_shapes.items())):
        params[name] = jax.random.uniform(kk, shape, jnp.float32, -k, k)
    return params


def gru_reference(x, params):
    """Pure-JAX reference (lax.scan) for validation."""
    T, B, I = x.shape
    H = params["whr"].shape[0]

    def step(h, xt):
        r = jax.nn.sigmoid(xt @ params["wir"] + params["bir"]
                           + h @ params["whr"] + params["bhr"])
        z = jax.nn.sigmoid(xt @ params["wiz"] + params["biz"]
                           + h @ params["whz"] + params["bhz"])
        n = jnp.tanh(xt @ params["win"] + params["bin"]
                     + r * (h @ params["whn"] + params["bhn"]))
        h_new = (1.0 - z) * n + z * h
        return h_new, h_new

    h0 = jnp.zeros((B, H), jnp.float32)
    hT, outs = jax.lax.scan(step, h0, x)
    return outs, hT[None]


if __name__ == "__main__":
    T, B, I, H = 8, 2, 16, 32   # seq_len, batch, input_size, hidden_size

    key = jax.random.PRNGKey(0)
    k_param, k_x = jax.random.split(key)
    params = init_params(k_param, I, H)
    x = jax.random.normal(k_x, (T, B, I), jnp.float32)

    output, hidden = encoder_rnn_forward(x, params)
    output = jax.block_until_ready(output)
    hidden = jax.block_until_ready(hidden)

    out_ref, hid_ref = gru_reference(x, params)
    assert output.shape == (T, B, H) and hidden.shape == (1, B, H)
    assert jnp.allclose(output, out_ref, atol=1e-5, rtol=1e-5)
    assert jnp.allclose(hidden, hid_ref, atol=1e-5, rtol=1e-5)

    print("KERNEL_OK")
</pallas_src>

<mosaic_0001>
module attributes {stable_mosaic.version = 11 : i64} {
  func.func @gru_kernel(%arg0: i32, %arg1: memref<64x128xf32, #tpu.memory_space<vmem>>, %arg2: memref<128x384xf32, #tpu.memory_space<vmem>>, %arg3: memref<128x384xf32, #tpu.memory_space<vmem>>, %arg4: memref<1x384xf32, #tpu.memory_space<vmem>>, %arg5: memref<1x128xf32, #tpu.memory_space<vmem>>, %arg6: memref<64x128xf32, #tpu.memory_space<vmem>>, %arg7: memref<8x128xf32, #tpu.memory_space<vmem>>) attributes {dimension_semantics = [#tpu.dimension_semantics<arbitrary>], iteration_bounds = array<i64: 1>, scalar_prefetch = 0 : i64, scratch_operands = 0 : i64, tpu.core_type = #tpu.core_type<tc>, window_params = [{pipeline_mode = #tpu.pipeline_mode<synchronous>, transform_indices = @transform_0, window_bounds = array<i64: 64, 128>}, {pipeline_mode = #tpu.pipeline_mode<synchronous>, transform_indices = @transform_1, window_bounds = array<i64: 128, 384>}, {pipeline_mode = #tpu.pipeline_mode<synchronous>, transform_indices = @transform_2, window_bounds = array<i64: 128, 384>}, {pipeline_mode = #tpu.pipeline_mode<synchronous>, transform_indices = @transform_3, window_bounds = array<i64: 1, 384>}, {pipeline_mode = #tpu.pipeline_mode<synchronous>, transform_indices = @transform_4, window_bounds = array<i64: 1, 128>}, {pipeline_mode = #tpu.pipeline_mode<synchronous>, transform_indices = @transform_5, window_bounds = array<i64: 64, 128>}, {pipeline_mode = #tpu.pipeline_mode<synchronous>, transform_indices = @transform_6, window_bounds = array<i64: 8, 128>}]} {
    %c0 = arith.constant 0 : index
    %c0_0 = arith.constant 0 : index
    %0 = vector.load %arg1[%c0, %c0_0] : memref<64x128xf32, #tpu.memory_space<vmem>>, vector<64x128xf32>
    %c0_1 = arith.constant 0 : index
    %c0_2 = arith.constant 0 : index
    %1 = vector.load %arg2[%c0_1, %c0_2] : memref<128x384xf32, #tpu.memory_space<vmem>>, vector<128x384xf32>
    %cst = arith.constant dense<0.000000e+00> : vector<64x384xf32>
    %2 = tpu.matmul %0, %1, %cst {dimension_numbers = #tpu.dot_dimension_numbers<[1], [0], [0], [1], [0, 0, 1, 1], [], []>} : vector<64x128xf32>, vector<128x384xf32>, vector<64x384xf32> -> vector<64x384xf32>
    %c0_3 = arith.constant 0 : index
    %c0_4 = arith.constant 0 : index
    %3 = vector.load %arg4[%c0_3, %c0_4] : memref<1x384xf32, #tpu.memory_space<vmem>>, vector<1x384xf32>
    %4 = vector.broadcast %3 : vector<1x384xf32> to vector<64x384xf32>
    %5 = arith.addf %2, %4 : vector<64x384xf32>
    %c0_5 = arith.constant 0 : index
    %c0_6 = arith.constant 0 : index
    %6 = vector.load %arg3[%c0_5, %c0_6] : memref<128x384xf32, #tpu.memory_space<vmem>>, vector<128x384xf32>
    %c0_7 = arith.constant 0 : index
    %c0_8 = arith.constant 0 : index
    %7 = vector.load %arg5[%c0_7, %c0_8] : memref<1x128xf32, #tpu.memory_space<vmem>>, vector<1x128xf32>
    %8 = vector.shape_cast %7 : vector<1x128xf32> to vector<1x128xf32>
    %9 = vector.broadcast %8 : vector<1x128xf32> to vector<8x128xf32>
    %cst_9 = arith.constant 0.000000e+00 : f32
    %10 = vector.broadcast %cst_9 : f32 to vector<8x128xf32>
    %11 = vector.extract_strided_slice %5 {offsets = [0, 0], sizes = [8, 384], strides = [1, 1]} : vector<64x384xf32> to vector<8x384xf32>
    %cst_10 = arith.constant dense<0.000000e+00> : vector<8x384xf32>
    %12 = tpu.matmul %10, %6, %cst_10 {dimension_numbers = #tpu.dot_dimension_numbers<[1], [0], [0], [1], [0, 0, 1, 1], [], []>} : vector<8x128xf32>, vector<128x384xf32>, vector<8x384xf32> -> vector<8x384xf32>
    %13 = vector.extract_strided_slice %11 {offsets = [0, 0], sizes = [8, 128], strides = [1, 1]} : vector<8x384xf32> to vector<8x128xf32>
    %14 = vector.extract_strided_slice %12 {offsets = [0, 0], sizes = [8, 128], strides = [1, 1]} : vector<8x384xf32> to vector<8x128xf32>
    %15 = arith.addf %13, %14 : vector<8x128xf32>
    %16 = arith.negf %15 : vector<8x128xf32>
    %17 = math.exp %16 : vector<8x128xf32>
    %cst_11 = arith.constant 1.000000e+00 : f32
    %18 = vector.broadcast %cst_11 : f32 to vector<8x128xf32>
    %19 = arith.addf %18, %17 : vector<8x128xf32>
    %20 = arith.divf %18, %19 : vector<8x128xf32>
    %21 = vector.extract_strided_slice %11 {offsets = [0, 128], sizes = [8, 128], strides = [1, 1]} : vector<8x384xf32> to vector<8x128xf32>
    %22 = vector.extract_strided_slice %12 {offsets = [0, 128], sizes = [8, 128], strides = [1, 1]} : vector<8x384xf32> to vector<8x128xf32>
    %23 = arith.addf %21, %22 : vector<8x128xf32>
    %24 = arith.negf %23 : vector<8x128xf32>
    %25 = math.exp %24 : vector<8x128xf32>
    %cst_12 = arith.constant 1.000000e+00 : f32
    %26 = vector.broadcast %cst_12 : f32 to vector<8x128xf32>
    %27 = arith.addf %26, %25 : vector<8x128xf32>
    %28 = arith.divf %26, %27 : vector<8x128xf32>
    %29 = vector.extract_strided_slice %11 {offsets = [0, 256], sizes = [8, 128], strides = [1, 1]} : vector<8x384xf32> to vector<8x128xf32>
    %30 = vector.extract_strided_slice %12 {offsets = [0, 256], sizes = [8, 128], strides = [1, 1]} : vector<8x384xf32> to vector<8x128xf32>
    %31 = arith.addf %30, %9 : vector<8x128xf32>
    %32 = arith.mulf %20, %31 : vector<8x128xf32>
    %33 = arith.addf %29, %32 : vector<8x128xf32>
    %34 = math.tanh %33 : vector<8x128xf32>
    %cst_13 = arith.constant 1.000000e+00 : f32
    %35 = vector.broadcast %cst_13 : f32 to vector<8x128xf32>
    %36 = arith.subf %35, %28 : vector<8x128xf32>
    %37 = arith.mulf %36, %34 : vector<8x128xf32>
    %38 = arith.mulf %28, %10 : vector<8x128xf32>
    %39 = arith.addf %37, %38 : vector<8x128xf32>
    %c0_14 = arith.constant 0 : index
    %c0_15 = arith.constant 0 : index
    %40 = vector.load %arg6[%c0_14, %c0_15] : memref<64x128xf32, #tpu.memory_space<vmem>>, vector<8x128xf32>
    tpu.vector_store %arg6[%c0_14, %c0_15], %39 {strides = array<i32>} : memref<64x128xf32, #tpu.memory_space<vmem>>, vector<8x128xf32>,
    %41 = vector.extract_strided_slice %5 {offsets = [8, 0], sizes = [8, 384], strides = [1, 1]} : vector<64x384xf32> to vector<8x384xf32>
    %cst_16 = arith.constant dense<0.000000e+00> : vector<8x384xf32>
    %42 = tpu.matmul %39, %6, %cst_16 {dimension_numbers = #tpu.dot_dimension_numbers<[1], [0], [0], [1], [0, 0, 1, 1], [], []>} : vector<8x128xf32>, vector<128x384xf32>, vector<8x384xf32> -> vector<8x384xf32>
    %43 = vector.extract_strided_slice %41 {offsets = [0, 0], sizes = [8, 128], strides = [1, 1]} : vector<8x384xf32> to vector<8x128xf32>
    %44 = vector.extract_strided_slice %42 {offsets = [0, 0], sizes = [8, 128], strides = [1, 1]} : vector<8x384xf32> to vector<8x128xf32>
    %45 = arith.addf %43, %44 : vector<8x128xf32>
    %46 = arith.negf %45 : vector<8x128xf32>
    %47 = math.exp %46 : vector<8x128xf32>
    %cst_17 = arith.constant 1.000000e+00 : f32
    %48 = vector.broadcast %cst_17 : f32 to vector<8x128xf32>
    %49 = arith.addf %48, %47 : vector<8x128xf32>
    %50 = arith.divf %48, %49 : vector<8x128xf32>
    %51 = vector.extract_strided_slice %41 {offsets = [0, 128], sizes = [8, 128], strides = [1, 1]} : vector<8x384xf32> to vector<8x128xf32>
    %52 = vector.extract_strided_slice %42 {offsets = [0, 128], sizes = [8, 128], strides = [1, 1]} : vector<8x384xf32> to vector<8x128xf32>
    %53 = arith.addf %51, %52 : vector<8x128xf32>
    %54 = arith.negf %53 : vector<8x128xf32>
    %55 = math.exp %54 : vector<8x128xf32>
    %cst_18 = arith.constant 1.000000e+00 : f32
    %56 = vector.broadcast %cst_18 : f32 to vector<8x128xf32>
    %57 = arith.addf %56, %55 : vector<8x128xf32>
    %58 = arith.divf %56, %57 : vector<8x128xf32>
    %59 = vector.extract_strided_slice %41 {offsets = [0, 256], sizes = [8, 128], strides = [1, 1]} : vector<8x384xf32> to vector<8x128xf32>
    %60 = vector.extract_strided_slice %42 {offsets = [0, 256], sizes = [8, 128], strides = [1, 1]} : vector<8x384xf32> to vector<8x128xf32>
    %61 = arith.addf %60, %9 : vector<8x128xf32>
    %62 = arith.mulf %50, %61 : vector<8x128xf32>
    %63 = arith.addf %59, %62 : vector<8x128xf32>
    %64 = math.tanh %63 : vector<8x128xf32>
    %cst_19 = arith.constant 1.000000e+00 : f32
    %65 = vector.broadcast %cst_19 : f32 to vector<8x128xf32>
    %66 = arith.subf %65, %58 : vector<8x128xf32>
    %67 = arith.mulf %66, %64 : vector<8x128xf32>
    %68 = arith.mulf %58, %39 : vector<8x128xf32>
    %69 = arith.addf %67, %68 : vector<8x128xf32>
    %c8 = arith.constant 8 : index
    %c0_20 = arith.constant 0 : index
    %70 = vector.load %arg6[%c8, %c0_20] : memref<64x128xf32, #tpu.memory_space<vmem>>, vector<8x128xf32>
    tpu.vector_store %arg6[%c8, %c0_20], %69 {strides = array<i32>} : memref<64x128xf32, #tpu.memory_space<vmem>>, vector<8x128xf32>,
    %71 = vector.extract_strided_slice %5 {offsets = [16, 0], sizes = [8, 384], strides = [1, 1]} : vector<64x384xf32> to vector<8x384xf32>
    %cst_21 = arith.constant dense<0.000000e+00> : vector<8x384xf32>
    %72 = tpu.matmul %69, %6, %cst_21 {dimension_numbers = #tpu.dot_dimension_numbers<[1], [0], [0], [1], [0, 0, 1, 1], [], []>} : vector<8x128xf32>, vector<128x384xf32>, vector<8x384xf32> -> vector<8x384xf32>
    %73 = vector.extract_strided_slice %71 {offsets = [0, 0], sizes = [8, 128], strides = [1, 1]} : vector<8x384xf32> to vector<8x128xf32>
    %74 = vector.extract_strided_slice %72 {offsets = [0, 0], sizes = [8, 128], strides = [1, 1]} : vector<8x384xf32> to vector<8x128xf32>
    %75 = arith.addf %73, %74 : vector<8x128xf32>
    %76 = arith.negf %75 : vector<8x128xf32>
    %77 = math.exp %76 : vector<8x128xf32>
    %cst_22 = arith.constant 1.000000e+00 : f32
    %78 = vector.broadcast %cst_22 : f32 to vector<8x128xf32>
    %79 = arith.addf %78, %77 : vector<8x128xf32>
    %80 = arith.divf %78, %79 : vector<8x128xf32>
    %81 = vector.extract_strided_slice %71 {offsets = [0, 128], sizes = [8, 128], strides = [1, 1]} : vector<8x384xf32> to vector<8x128xf32>
    %82 = vector.extract_strided_slice %72 {offsets = [0, 128], sizes = [8, 128], strides = [1, 1]} : vector<8x384xf32> to vector<8x128xf32>
    %83 = arith.addf %81, %82 : vector<8x128xf32>
    %84 = arith.negf %83 : vector<8x128xf32>
    %85 = math.exp %84 : vector<8x128xf32>
    %cst_23 = arith.constant 1.000000e+00 : f32
    %86 = vector.broadcast %cst_23 : f32 to vector<8x128xf32>
    %87 = arith.addf %86, %85 : vector<8x128xf32>
    %88 = arith.divf %86, %87 : vector<8x128xf32>
    %89 = vector.extract_strided_slice %71 {offsets = [0, 256], sizes = [8, 128], strides = [1, 1]} : vector<8x384xf32> to vector<8x128xf32>
    %90 = vector.extract_strided_slice %72 {offsets = [0, 256], sizes = [8, 128], strides = [1, 1]} : vector<8x384xf32> to vector<8x128xf32>
    %91 = arith.addf %90, %9 : vector<8x128xf32>
    %92 = arith.mulf %80, %91 : vector<8x128xf32>
    %93 = arith.addf %89, %92 : vector<8x128xf32>
    %94 = math.tanh %93 : vector<8x128xf32>
    %cst_24 = arith.constant 1.000000e+00 : f32
    %95 = vector.broadcast %cst_24 : f32 to vector<8x128xf32>
    %96 = arith.subf %95, %88 : vector<8x128xf32>
    %97 = arith.mulf %96, %94 : vector<8x128xf32>
    %98 = arith.mulf %88, %69 : vector<8x128xf32>
    %99 = arith.addf %97, %98 : vector<8x128xf32>
    %c16 = arith.constant 16 : index
    %c0_25 = arith.constant 0 : index
    %100 = vector.load %arg6[%c16, %c0_25] : memref<64x128xf32, #tpu.memory_space<vmem>>, vector<8x128xf32>
    tpu.vector_store %arg6[%c16, %c0_25], %99 {strides = array<i32>} : memref<64x128xf32, #tpu.memory_space<vmem>>, vector<8x128xf32>,
    %101 = vector.extract_strided_slice %5 {offsets = [24, 0], sizes = [8, 384], strides = [1, 1]} : vector<64x384xf32> to vector<8x384xf32>
    %cst_26 = arith.constant dense<0.000000e+00> : vector<8x384xf32>
    %102 = tpu.matmul %99, %6, %cst_26 {dimension_numbers = #tpu.dot_dimension_numbers<[1], [0], [0], [1], [0, 0, 1, 1], [], []>} : vector<8x128xf32>, vector<128x384xf32>, vector<8x384xf32> -> vector<8x384xf32>
    %103 = vector.extract_strided_slice %101 {offsets = [0, 0], sizes = [8, 128], strides = [1, 1]} : vector<8x384xf32> to vector<8x128xf32>
    %104 = vector.extract_strided_slice %102 {offsets = [0, 0], sizes = [8, 128], strides = [1, 1]} : vector<8x384xf32> to vector<8x128xf32>
    %105 = arith.addf %103, %104 : vector<8x128xf32>
    %106 = arith.negf %105 : vector<8x128xf32>
    %107 = math.exp %106 : vector<8x128xf32>
    %cst_27 = arith.constant 1.000000e+00 : f32
    %108 = vector.broadcast %cst_27 : f32 to vector<8x128xf32>
    %109 = arith.addf %108, %107 : vector<8x128xf32>
    %110 = arith.divf %108, %109 : vector<8x128xf32>
    %111 = vector.extract_strided_slice %101 {offsets = [0, 128], sizes = [8, 128], strides = [1, 1]} : vector<8x384xf32> to vector<8x128xf32>
    %112 = vector.extract_strided_slice %102 {offsets = [0, 128], sizes = [8, 128], strides = [1, 1]} : vector<8x384xf32> to vector<8x128xf32>
    %113 = arith.addf %111, %112 : vector<8x128xf32>
    %114 = arith.negf %113 : vector<8x128xf32>
    %115 = math.exp %114 : vector<8x128xf32>
    %cst_28 = arith.constant 1.000000e+00 : f32
    %116 = vector.broadcast %cst_28 : f32 to vector<8x128xf32>
    %117 = arith.addf %116, %115 : vector<8x128xf32>
    %118 = arith.divf %116, %117 : vector<8x128xf32>
    %119 = vector.extract_strided_slice %101 {offsets = [0, 256], sizes = [8, 128], strides = [1, 1]} : vector<8x384xf32> to vector<8x128xf32>
    %120 = vector.extract_strided_slice %102 {offsets = [0, 256], sizes = [8, 128], strides = [1, 1]} : vector<8x384xf32> to vector<8x128xf32>
    %121 = arith.addf %120, %9 : vector<8x128xf32>
    %122 = arith.mulf %110, %121 : vector<8x128xf32>
    %123 = arith.addf %119, %122 : vector<8x128xf32>
    %124 = math.tanh %123 : vector<8x128xf32>
    %cst_29 = arith.constant 1.000000e+00 : f32
    %125 = vector.broadcast %cst_29 : f32 to vector<8x128xf32>
    %126 = arith.subf %125, %118 : vector<8x128xf32>
    %127 = arith.mulf %126, %124 : vector<8x128xf32>
    %128 = arith.mulf %118, %99 : vector<8x128xf32>
    %129 = arith.addf %127, %128 : vector<8x128xf32>
    %c24 = arith.constant 24 : index
    %c0_30 = arith.constant 0 : index
    %130 = vector.load %arg6[%c24, %c0_30] : memref<64x128xf32, #tpu.memory_space<vmem>>, vector<8x128xf32>
    tpu.vector_store %arg6[%c24, %c0_30], %129 {strides = array<i32>} : memref<64x128xf32, #tpu.memory_space<vmem>>, vector<8x128xf32>,
    %131 = vector.extract_strided_slice %5 {offsets = [32, 0], sizes = [8, 384], strides = [1, 1]} : vector<64x384xf32> to vector<8x384xf32>
    %cst_31 = arith.constant dense<0.000000e+00> : vector<8x384xf32>
    %132 = tpu.matmul %129, %6, %cst_31 {dimension_numbers = #tpu.dot_dimension_numbers<[1], [0], [0], [1], [0, 0, 1, 1], [], []>} : vector<8x128xf32>, vector<128x384xf32>, vector<8x384xf32> -> vector<8x384xf32>
    %133 = vector.extract_strided_slice %131 {offsets = [0, 0], sizes = [8, 128], strides = [1, 1]} : vector<8x384xf32> to vector<8x128xf32>
    %134 = vector.extract_strided_slice %132 {offsets = [0, 0], sizes = [8, 128], strides = [1, 1]} : vector<8x384xf32> to vector<8x128xf32>
    %135 = arith.addf %133, %134 : vector<8x128xf32>
    %136 = arith.negf %135 : vector<8x128xf32>
    %137 = math.exp %136 : vector<8x128xf32>
    %cst_32 = arith.constant 1.000000e+00 : f32
    %138 = vector.broadcast %cst_32 : f32 to vector<8x128xf32>
    %139 = arith.addf %138, %137 : vector<8x128xf32>
    %140 = arith.divf %138, %139 : vector<8x128xf32>
    %141 = vector.extract_strided_slice %131 {offsets = [0, 128], sizes = [8, 128], strides = [1, 1]} : vector<8x384xf32> to vector<8x128xf32>
    %142 = vector.extract_strided_slice %132 {offsets = [0, 128], sizes = [8, 128], strides = [1, 1]} : vector<8x384xf32> to vector<8x128xf32>
    %143 = arith.addf %141, %142 : vector<8x128xf32>
    %144 = arith.negf %143 : vector<8x128xf32>
    %145 = math.exp %144 : vector<8x128xf32>
    %cst_33 = arith.constant 1.000000e+00 : f32
    %146 = vector.broadcast %cst_33 : f32 to vector<8x128xf32>
    %147 = arith.addf %146, %145 : vector<8x128xf32>
    %148 = arith.divf %146, %147 : vector<8x128xf32>
    %149 = vector.extract_strided_slice %131 {offsets = [0, 256], sizes = [8, 128], strides = [1, 1]} : vector<8x384xf32> to vector<8x128xf32>
    %150 = vector.extract_strided_slice %132 {offsets = [0, 256], sizes = [8, 128], strides = [1, 1]} : vector<8x384xf32> to vector<8x128xf32>
    %151 = arith.addf %150, %9 : vector<8x128xf32>
    %152 = arith.mulf %140, %151 : vector<8x128xf32>
    %153 = arith.addf %149, %152 : vector<8x128xf32>
    %154 = math.tanh %153 : vector<8x128xf32>
    %cst_34 = arith.constant 1.000000e+00 : f32
    %155 = vector.broadcast %cst_34 : f32 to vector<8x128xf32>
    %156 = arith.subf %155, %148 : vector<8x128xf32>
    %157 = arith.mulf %156, %154 : vector<8x128xf32>
    %158 = arith.mulf %148, %129 : vector<8x128xf32>
    %159 = arith.addf %157, %158 : vector<8x128xf32>
    %c32 = arith.constant 32 : index
    %c0_35 = arith.constant 0 : index
    %160 = vector.load %arg6[%c32, %c0_35] : memref<64x128xf32, #tpu.memory_space<vmem>>, vector<8x128xf32>
    tpu.vector_store %arg6[%c32, %c0_35], %159 {strides = array<i32>} : memref<64x128xf32, #tpu.memory_space<vmem>>, vector<8x128xf32>,
    %161 = vector.extract_strided_slice %5 {offsets = [40, 0], sizes = [8, 384], strides = [1, 1]} : vector<64x384xf32> to vector<8x384xf32>
    %cst_36 = arith.constant dense<0.000000e+00> : vector<8x384xf32>
    %162 = tpu.matmul %159, %6, %cst_36 {dimension_numbers = #tpu.dot_dimension_numbers<[1], [0], [0], [1], [0, 0, 1, 1], [], []>} : vector<8x128xf32>, vector<128x384xf32>, vector<8x384xf32> -> vector<8x384xf32>
    %163 = vector.extract_strided_slice %161 {offsets = [0, 0], sizes = [8, 128], strides = [1, 1]} : vector<8x384xf32> to vector<8x128xf32>
    %164 = vector.extract_strided_slice %162 {offsets = [0, 0], sizes = [8, 128], strides = [1, 1]} : vector<8x384xf32> to vector<8x128xf32>
    %165 = arith.addf %163, %164 : vector<8x128xf32>
    %166 = arith.negf %165 : vector<8x128xf32>
    %167 = math.exp %166 : vector<8x128xf32>
    %cst_37 = arith.constant 1.000000e+00 : f32
    %168 = vector.broadcast %cst_37 : f32 to vector<8x128xf32>
    %169 = arith.addf %168, %167 : vector<8x128xf32>
    %170 = arith.divf %168, %169 : vector<8x128xf32>
    %171 = vector.extract_strided_slice %161 {offsets = [0, 128], sizes = [8, 128], strides = [1, 1]} : vector<8x384xf32> to vector<8x128xf32>
    %172 = vector.extract_strided_slice %162 {offsets = [0, 128], sizes = [8, 128], strides = [1, 1]} : vector<8x384xf32> to vector<8x128xf32>
    %173 = arith.addf %171, %172 : vector<8x128xf32>
    %174 = arith.negf %173 : vector<8x128xf32>
    %175 = math.exp %174 : vector<8x128xf32>
    %cst_38 = arith.constant 1.000000e+00 : f32
    %176 = vector.broadcast %cst_38 : f32 to vector<8x128xf32>
    %177 = arith.addf %176, %175 : vector<8x128xf32>
    %178 = arith.divf %176, %177 : vector<8x128xf32>
    %179 = vector.extract_strided_slice %161 {offsets = [0, 256], sizes = [8, 128], strides = [1, 1]} : vector<8x384xf32> to vector<8x128xf32>
    %180 = vector.extract_strided_slice %162 {offsets = [0, 256], sizes = [8, 128], strides = [1, 1]} : vector<8x384xf32> to vector<8x128xf32>
    %181 = arith.addf %180, %9 : vector<8x128xf32>
    %182 = arith.mulf %170, %181 : vector<8x128xf32>
    %183 = arith.addf %179, %182 : vector<8x128xf32>
    %184 = math.tanh %183 : vector<8x128xf32>
    %cst_39 = arith.constant 1.000000e+00 : f32
    %185 = vector.broadcast %cst_39 : f32 to vector<8x128xf32>
    %186 = arith.subf %185, %178 : vector<8x128xf32>
    %187 = arith.mulf %186, %184 : vector<8x128xf32>
    %188 = arith.mulf %178, %159 : vector<8x128xf32>
    %189 = arith.addf %187, %188 : vector<8x128xf32>
    %c40 = arith.constant 40 : index
    %c0_40 = arith.constant 0 : index
    %190 = vector.load %arg6[%c40, %c0_40] : memref<64x128xf32, #tpu.memory_space<vmem>>, vector<8x128xf32>
    tpu.vector_store %arg6[%c40, %c0_40], %189 {strides = array<i32>} : memref<64x128xf32, #tpu.memory_space<vmem>>, vector<8x128xf32>,
    %191 = vector.extract_strided_slice %5 {offsets = [48, 0], sizes = [8, 384], strides = [1, 1]} : vector<64x384xf32> to vector<8x384xf32>
    %cst_41 = arith.constant dense<0.000000e+00> : vector<8x384xf32>
    %192 = tpu.matmul %189, %6, %cst_41 {dimension_numbers = #tpu.dot_dimension_numbers<[1], [0], [0], [1], [0, 0, 1, 1], [], []>} : vector<8x128xf32>, vector<128x384xf32>, vector<8x384xf32> -> vector<8x384xf32>
    %193 = vector.extract_strided_slice %191 {offsets = [0, 0], sizes = [8, 128], strides = [1, 1]} : vector<8x384xf32> to vector<8x128xf32>
    %194 = vector.extract_strided_slice %192 {offsets = [0, 0], sizes = [8, 128], strides = [1, 1]} : vector<8x384xf32> to vector<8x128xf32>
    %195 = arith.addf %193, %194 : vector<8x128xf32>
    %196 = arith.negf %195 : vector<8x128xf32>
    %197 = math.exp %196 : vector<8x128xf32>
    %cst_42 = arith.constant 1.000000e+00 : f32
    %198 = vector.broadcast %cst_42 : f32 to vector<8x128xf32>
    %199 = arith.addf %198, %197 : vector<8x128xf32>
    %200 = arith.divf %198, %199 : vector<8x128xf32>
    %201 = vector.extract_strided_slice %191 {offsets = [0, 128], sizes = [8, 128], strides = [1, 1]} : vector<8x384xf32> to vector<8x128xf32>
    %202 = vector.extract_strided_slice %192 {offsets = [0, 128], sizes = [8, 128], strides = [1, 1]} : vector<8x384xf32> to vector<8x128xf32>
    %203 = arith.addf %201, %202 : vector<8x128xf32>
    %204 = arith.negf %203 : vector<8x128xf32>
    %205 = math.exp %204 : vector<8x128xf32>
    %cst_43 = arith.constant 1.000000e+00 : f32
    %206 = vector.broadcast %cst_43 : f32 to vector<8x128xf32>
    %207 = arith.addf %206, %205 : vector<8x128xf32>
    %208 = arith.divf %206, %207 : vector<8x128xf32>
    %209 = vector.extract_strided_slice %191 {offsets = [0, 256], sizes = [8, 128], strides = [1, 1]} : vector<8x384xf32> to vector<8x128xf32>
    %210 = vector.extract_strided_slice %192 {offsets = [0, 256], sizes = [8, 128], strides = [1, 1]} : vector<8x384xf32> to vector<8x128xf32>
    %211 = arith.addf %210, %9 : vector<8x128xf32>
    %212 = arith.mulf %200, %211 : vector<8x128xf32>
    %213 = arith.addf %209, %212 : vector<8x128xf32>
    %214 = math.tanh %213 : vector<8x128xf32>
    %cst_44 = arith.constant 1.000000e+00 : f32
    %215 = vector.broadcast %cst_44 : f32 to vector<8x128xf32>
    %216 = arith.subf %215, %208 : vector<8x128xf32>
    %217 = arith.mulf %216, %214 : vector<8x128xf32>
    %218 = arith.mulf %208, %189 : vector<8x128xf32>
    %219 = arith.addf %217, %218 : vector<8x128xf32>
    %c48 = arith.constant 48 : index
    %c0_45 = arith.constant 0 : index
    %220 = vector.load %arg6[%c48, %c0_45] : memref<64x128xf32, #tpu.memory_space<vmem>>, vector<8x128xf32>
    tpu.vector_store %arg6[%c48, %c0_45], %219 {strides = array<i32>} : memref<64x128xf32, #tpu.memory_space<vmem>>, vector<8x128xf32>,
    %221 = vector.extract_strided_slice %5 {offsets = [56, 0], sizes = [8, 384], strides = [1, 1]} : vector<64x384xf32> to vector<8x384xf32>
    %cst_46 = arith.constant dense<0.000000e+00> : vector<8x384xf32>
    %222 = tpu.matmul %219, %6, %cst_46 {dimension_numbers = #tpu.dot_dimension_numbers<[1], [0], [0], [1], [0, 0, 1, 1], [], []>} : vector<8x128xf32>, vector<128x384xf32>, vector<8x384xf32> -> vector<8x384xf32>
    %223 = vector.extract_strided_slice %221 {offsets = [0, 0], sizes = [8, 128], strides = [1, 1]} : vector<8x384xf32> to vector<8x128xf32>
    %224 = vector.extract_strided_slice %222 {offsets = [0, 0], sizes = [8, 128], strides = [1, 1]} : vector<8x384xf32> to vector<8x128xf32>
    %225 = arith.addf %223, %224 : vector<8x128xf32>
    %226 = arith.negf %225 : vector<8x128xf32>
    %227 = math.exp %226 : vector<8x128xf32>
    %cst_47 = arith.constant 1.000000e+00 : f32
    %228 = vector.broadcast %cst_47 : f32 to vector<8x128xf32>
    %229 = arith.addf %228, %227 : vector<8x128xf32>
    %230 = arith.divf %228, %229 : vector<8x128xf32>
    %231 = vector.extract_strided_slice %221 {offsets = [0, 128], sizes = [8, 128], strides = [1, 1]} : vector<8x384xf32> to vector<8x128xf32>
    %232 = vector.extract_strided_slice %222 {offsets = [0, 128], sizes = [8, 128], strides = [1, 1]} : vector<8x384xf32> to vector<8x128xf32>
    %233 = arith.addf %231, %232 : vector<8x128xf32>
    %234 = arith.negf %233 : vector<8x128xf32>
    %235 = math.exp %234 : vector<8x128xf32>
    %cst_48 = arith.constant 1.000000e+00 : f32
    %236 = vector.broadcast %cst_48 : f32 to vector<8x128xf32>
    %237 = arith.addf %236, %235 : vector<8x128xf32>
    %238 = arith.divf %236, %237 : vector<8x128xf32>
    %239 = vector.extract_strided_slice %221 {offsets = [0, 256], sizes = [8, 128], strides = [1, 1]} : vector<8x384xf32> to vector<8x128xf32>
    %240 = vector.extract_strided_slice %222 {offsets = [0, 256], sizes = [8, 128], strides = [1, 1]} : vector<8x384xf32> to vector<8x128xf32>
    %241 = arith.addf %240, %9 : vector<8x128xf32>
    %242 = arith.mulf %230, %241 : vector<8x128xf32>
    %243 = arith.addf %239, %242 : vector<8x128xf32>
    %244 = math.tanh %243 : vector<8x128xf32>
    %cst_49 = arith.constant 1.000000e+00 : f32
    %245 = vector.broadcast %cst_49 : f32 to vector<8x128xf32>
    %246 = arith.subf %245, %238 : vector<8x128xf32>
    %247 = arith.mulf %246, %244 : vector<8x128xf32>
    %248 = arith.mulf %238, %219 : vector<8x128xf32>
    %249 = arith.addf %247, %248 : vector<8x128xf32>
    %c56 = arith.constant 56 : index
    %c0_50 = arith.constant 0 : index
    %250 = vector.load %arg6[%c56, %c0_50] : memref<64x128xf32, #tpu.memory_space<vmem>>, vector<8x128xf32>
    tpu.vector_store %arg6[%c56, %c0_50], %249 {strides = array<i32>} : memref<64x128xf32, #tpu.memory_space<vmem>>, vector<8x128xf32>,
    %c0_51 = arith.constant 0 : index
    %c0_52 = arith.constant 0 : index
    %251 = vector.load %arg7[%c0_51, %c0_52] : memref<8x128xf32, #tpu.memory_space<vmem>>, vector<8x128xf32>
    tpu.vector_store %arg7[%c0_51, %c0_52], %249 {strides = array<i32>} : memref<8x128xf32, #tpu.memory_space<vmem>>, vector<8x128xf32>,
    return
  }
  func.func @transform_0(%arg0: i32) -> (i32, i32) {
    %c0_i32 = arith.constant 0 : i32
    %c0_i32_0 = arith.constant 0 : i32
    %c0_i32_1 = arith.constant 0 : i32
    return %c0_i32, %c0_i32_0 : i32, i32
  }
  func.func @transform_1(%arg0: i32) -> (i32, i32) {
    %c0_i32 = arith.constant 0 : i32
    %c0_i32_0 = arith.constant 0 : i32
    %c0_i32_1 = arith.constant 0 : i32
    return %c0_i32, %c0_i32_0 : i32, i32
  }
  func.func @transform_2(%arg0: i32) -> (i32, i32) {
    %c0_i32 = arith.constant 0 : i32
    %c0_i32_0 = arith.constant 0 : i32
    %c0_i32_1 = arith.constant 0 : i32
    return %c0_i32, %c0_i32_0 : i32, i32
  }
  func.func @transform_3(%arg0: i32) -> (i32, i32) {
    %c0_i32 = arith.constant 0 : i32
    %c0_i32_0 = arith.constant 0 : i32
    %c0_i32_1 = arith.constant 0 : i32
    return %c0_i32, %c0_i32_0 : i32, i32
  }
  func.func @transform_4(%arg0: i32) -> (i32, i32) {
    %c0_i32 = arith.constant 0 : i32
    %c0_i32_0 = arith.constant 0 : i32
    %c0_i32_1 = arith.constant 0 : i32
    return %c0_i32, %c0_i32_0 : i32, i32
  }
  func.func @transform_5(%arg0: i32) -> (i32, i32) {
    %c0_i32 = arith.constant 0 : i32
    %c0_i32_0 = arith.constant 0 : i32
    %c0_i32_1 = arith.constant 0 : i32
    return %c0_i32, %c0_i32_0 : i32, i32
  }
  func.func @transform_6(%arg0: i32) -> (i32, i32) {
    %c0_i32 = arith.constant 0 : i32
    %c0_i32_0 = arith.constant 0 : i32
    %c0_i32_1 = arith.constant 0 : i32
    return %c0_i32, %c0_i32_0 : i32, i32
  }
}

</mosaic_0001>

<llo_original>
// kernel: tpu_custom_call.1
$region0: #{tpu_custom_call.1}
  #allocation0 [shape = 'u32[]', space=smem, size = 0x4, offset = 0x4, fixed_abs, tag = 'smem constant byte address 0x4 - core index']
  #allocation1 [shape = 'u32[72,128]{1,0:T(1,128)}', space=vmem, size = 0x9000, scoped, tag = 'internal scratch']
  %s0 = inlined_call_operand.hbm [shape: f32[64,128], index: 0, kind: input, shape index: {}]
  %s1 = inlined_call_operand.hbm [shape: f32[128,384], index: 1, kind: input, shape index: {}]
  %s2 = inlined_call_operand.hbm [shape: f32[128,384], index: 2, kind: input, shape index: {}]
  %s3 = inlined_call_operand.hbm [shape: f32[1,384], index: 3, kind: input, shape index: {}]
  %s4 = inlined_call_operand.vmem [shape: f32[1,128], index: 4, kind: input, shape index: {}]
  %s5 = inlined_call_operand.hbm [shape: f32[64,128], index: 5, kind: output, shape index: {0}]
  %s6 = inlined_call_operand.hbm [shape: f32[8,128], index: 6, kind: output, shape index: {1}]
  %7 = xla_tuple %s5, %s6
  %s8 = sld [smem:[#allocation0]]
  $region54: #{tpu_custom_call.1} parent=0
    _
  %s10 = ssub.s32 1, %s8
  %s11 = scalar_select 0, %s10, %s8
  $region1: #{tpu_custom_call.1} parent=0
    #allocation2 [shape = 'u8[32768]{0}', space=vmem, size = 0x8000, scoped, tag = 'input window, operand 0, single buffered']
    #allocation3 [shape = 's32[1]{0}', space=sflag, size = 0x4, scoped, tag = 'scoped memory for tpu_custom_call.1']
    #allocation4 [shape = 's32[1]{0}', space=sflag, size = 0x4, scoped, tag = 'scoped memory for tpu_custom_call.1']
    #allocation5 [shape = 'u8[196608]{0}', space=vmem, size = 0x30000, scoped, tag = 'input window, operand 1, single buffered']
    #allocation6 [shape = 's32[1]{0}', space=sflag, size = 0x4, scoped, tag = 'scoped memory for tpu_custom_call.1']
    #allocation7 [shape = 'u8[196608]{0}', space=vmem, size = 0x30000, scoped, tag = 'input window, operand 2, single buffered']
    #allocation8 [shape = 'u8[1536]{0}', space=vmem, size = 0x800, scoped, tag = 'input window, operand 3, single buffered']
    #allocation9 [shape = 's32[1]{0}', space=sflag, size = 0x4, scoped, tag = 'scoped memory for tpu_custom_call.1']
    #allocation10 [shape = 'u8[32768]{0}', space=vmem, size = 0x8000, scoped, tag = 'output window, operand 0, single buffered']
    #allocation11 [shape = 'u8[4096]{0}', space=vmem, size = 0x1000, scoped, tag = 'output window, operand 1, single buffered']
    #allocation12 [shape = 's32[1]{0}', space=sflag, size = 0x4, scoped, tag = 'scoped memory for tpu_custom_call.1']
    %12 = vsyncpa [#allocation3], 0
    %13 = vsyncpa [#allocation6], 0
    %14 = vsyncpa [#allocation9], 0
    %15 = vsyncpa [#allocation4], 0
    %16 = vsyncpa [#allocation12], 0
    // Predicated region
    $region2: #{tpu_custom_call.1} parent=1 // pred_check
      _
    $region3: #{tpu_custom_call.1} parent=1 // pred_check_branch
      %18 = sbr.rel (0) target = $region5
    $region4: #{tpu_custom_call.1} parent=1 // pred_region
      %20 = vsyncadd [#allocation3], 0
      %s21 = sshll.u32 %s0, 4
      %s22 = int_to_ptr.hbm [resolvable:$true] %s21
      %s23 = sshll.u32 [#allocation2], 4
      %s24 = int_to_ptr.vmem [resolvable:$true] %s23
      %29 = dma.hbm_to_vmem [thread:$0]  %s22, 1024, %s24, [#allocation3], 128, 128, 8
    $region5: #{tpu_custom_call.1} parent=1 // pred_fallthru
      _
    // Predicated region
    $region6: #{tpu_custom_call.1} parent=1 // pred_check
      _
    $region7: #{tpu_custom_call.1} parent=1 // pred_check_branch
      %31 = sbr.rel (0) target = $region9
    $region8: #{tpu_custom_call.1} parent=1 // pred_region
      %33 = vsyncadd [#allocation6], 0
      %s34 = sshll.u32 %s1, 4
      %s35 = int_to_ptr.hbm [resolvable:$true] %s34
      %s36 = sshll.u32 [#allocation5], 4
      %s37 = int_to_ptr.vmem [resolvable:$true] %s36
      %42 = dma.hbm_to_vmem [thread:$0]  %s35, 6144, %s37, [#allocation6], 384, 384, 24
    $region9: #{tpu_custom_call.1} parent=1 // pred_fallthru
      _
    // Predicated region
    $region10: #{tpu_custom_call.1} parent=1 // pred_check
      _
    $region11: #{tpu_custom_call.1} parent=1 // pred_check_branch
      %44 = sbr.rel (0) target = $region13
    $region12: #{tpu_custom_call.1} parent=1 // pred_region
      %46 = vsyncadd [#allocation6], 0
      %s47 = sshll.u32 %s2, 4
      %s48 = int_to_ptr.hbm [resolvable:$true] %s47
      %s49 = sshll.u32 [#allocation7], 4
      %s50 = int_to_ptr.vmem [resolvable:$true] %s49
      %55 = dma.hbm_to_vmem [thread:$0]  %s48, 6144, %s50, [#allocation6], 384, 384, 24
    $region13: #{tpu_custom_call.1} parent=1 // pred_fallthru
      _
    // Predicated region
    $region14: #{tpu_custom_call.1} parent=1 // pred_check
      _
    $region15: #{tpu_custom_call.1} parent=1 // pred_check_branch
      %57 = sbr.rel (0) target = $region17
    $region16: #{tpu_custom_call.1} parent=1 // pred_region
      %59 = vsyncadd [#allocation9], 0
      %s61 = sshll.u32 %s3, 4
      %s62 = int_to_ptr.hbm [resolvable:$true] %s61
      %s63 = sshll.u32 [#allocation8], 4
      %s64 = int_to_ptr.vmem [resolvable:$true] %s63
      %66 = dma.hbm_to_vmem [thread:$0]  %s62, 48, %s64, [#allocation9]
    $region17: #{tpu_custom_call.1} parent=1 // pred_fallthru
      _
    // Predicated region
    $region18: #{tpu_custom_call.1} parent=1 // pred_check
      _
    $region19: #{tpu_custom_call.1} parent=1 // pred_check_branch
      %68 = sbr.rel (0) target = $region21
    $region20: #{tpu_custom_call.1} parent=1 // pred_region
      _
    $region21: #{tpu_custom_call.1} parent=1 // pred_fallthru
      _
    // Predicated region
    $region22: #{tpu_custom_call.1} parent=1 // pred_check
      _
    $region23: #{tpu_custom_call.1} parent=1 // pred_check_branch
      %70 = sbr.rel (0) target = $region25
    $region24: #{tpu_custom_call.1} parent=1 // pred_region
      %72 = dma.done [#allocation3], 1024
    $region25: #{tpu_custom_call.1} parent=1 // pred_fallthru
      _
    // Predicated region
    $region26: #{tpu_custom_call.1} parent=1 // pred_check
      _
    $region27: #{tpu_custom_call.1} parent=1 // pred_check_branch
      %74 = sbr.rel (0) target = $region29
    $region28: #{tpu_custom_call.1} parent=1 // pred_region
      %76 = dma.done [#allocation6], 6144
    $region29: #{tpu_custom_call.1} parent=1 // pred_fallthru
      _
    // Predicated region
    $region30: #{tpu_custom_call.1} parent=1 // pred_check
      _
    $region31: #{tpu_custom_call.1} parent=1 // pred_check_branch
      %78 = sbr.rel (0) target = $region33
    $region32: #{tpu_custom_call.1} parent=1 // pred_region
      %80 = dma.done [#allocation6], 6144
    $region33: #{tpu_custom_call.1} parent=1 // pred_fallthru
      _
    // Predicated region
    $region34: #{tpu_custom_call.1} parent=1 // pred_check
      _
    $region35: #{tpu_custom_call.1} parent=1 // pred_check_branch
      %82 = sbr.rel (0) target = $region37
    $region36: #{tpu_custom_call.1} parent=1 // pred_region
      %84 = dma.done [#allocation9], 48
    $region37: #{tpu_custom_call.1} parent=1 // pred_fallthru
      _
    %v85 = vld [vmem:[#allocation2] sm:$0xff]
    %v86 = vld [vmem:[#allocation2 + $0x8] sm:$0xff]
    %v87 = vld [vmem:[#allocation2 + $0x10] sm:$0xff]
    %v88 = vld [vmem:[#allocation2 + $0x18] sm:$0xff]
    %v89 = vld [vmem:[#allocation2 + $0x20] sm:$0xff]
    %v90 = vld [vmem:[#allocation2 + $0x28] sm:$0xff]
    %v91 = vld [vmem:[#allocation2 + $0x30] sm:$0xff]
    %v92 = vld [vmem:[#allocation2 + $0x38] sm:$0xff]
    %v93 = vld [vmem:[#allocation5] sm:$0xff]
    %v94 = vld [vmem:[#allocation5 + $0x8] sm:$0xff]
    %v95 = vld [vmem:[#allocation5 + $0x10] sm:$0xff]
    %v96 = vld [vmem:[#allocation5 + $0x18] sm:$0xff]
    %v97 = vld [vmem:[#allocation5 + $0x20] sm:$0xff]
    %v98 = vld [vmem:[#allocation5 + $0x28] sm:$0xff]
    %v99 = vld [vmem:[#allocation5 + $0x30] sm:$0xff]
    %v100 = vld [vmem:[#allocation5 + $0x38] sm:$0xff]
    %v101 = vld [vmem:[#allocation5 + $0x40] sm:$0xff]
    %v102 = vld [vmem:[#allocation5 + $0x48] sm:$0xff]
    %v103 = vld [vmem:[#allocation5 + $0x50] sm:$0xff]
    %v104 = vld [vmem:[#allocation5 + $0x58] sm:$0xff]
    %v105 = vld [vmem:[#allocation5 + $0x60] sm:$0xff]
    %v106 = vld [vmem:[#allocation5 + $0x68] sm:$0xff]
    %v107 = vld [vmem:[#allocation5 + $0x70] sm:$0xff]
    %v108 = vld [vmem:[#allocation5 + $0x78] sm:$0xff]
    %v109 = vld [vmem:[#allocation5 + $0x80] sm:$0xff]
    %v110 = vld [vmem:[#allocation5 + $0x88] sm:$0xff]
    %v111 = vld [vmem:[#allocation5 + $0x90] sm:$0xff]
    %v112 = vld [vmem:[#allocation5 + $0x98] sm:$0xff]
    %v113 = vld [vmem:[#allocation5 + $0xa0] sm:$0xff]
    %v114 = vld [vmem:[#allocation5 + $0xa8] sm:$0xff]
    %v115 = vld [vmem:[#allocation5 + $0xb0] sm:$0xff]
    %v116 = vld [vmem:[#allocation5 + $0xb8] sm:$0xff]
    %v117 = vld [vmem:[#allocation5 + $0xc0] sm:$0xff]
    %v118 = vld [vmem:[#allocation5 + $0xc8] sm:$0xff]
    %v119 = vld [vmem:[#allocation5 + $0xd0] sm:$0xff]
    %v120 = vld [vmem:[#allocation5 + $0xd8] sm:$0xff]
    %v121 = vld [vmem:[#allocation5 + $0xe0] sm:$0xff]
    %v122 = vld [vmem:[#allocation5 + $0xe8] sm:$0xff]
    %v123 = vld [vmem:[#allocation5 + $0xf0] sm:$0xff]
    %v124 = vld [vmem:[#allocation5 + $0xf8] sm:$0xff]
    %v125 = vld [vmem:[#allocation5 + $0x100] sm:$0xff]
    %v126 = vld [vmem:[#allocation5 + $0x108] sm:$0xff]
    %v127 = vld [vmem:[#allocation5 + $0x110] sm:$0xff]
    %v128 = vld [vmem:[#allocation5 + $0x118] sm:$0xff]
    %v129 = vld [vmem:[#allocation5 + $0x120] sm:$0xff]
    %v130 = vld [vmem:[#allocation5 + $0x128] sm:$0xff]
    %v131 = vld [vmem:[#allocation5 + $0x130] sm:$0xff]
    %v132 = vld [vmem:[#allocation5 + $0x138] sm:$0xff]
    %v133 = vld [vmem:[#allocation5 + $0x140] sm:$0xff]
    %v134 = vld [vmem:[#allocation5 + $0x148] sm:$0xff]
    %v135 = vld [vmem:[#allocation5 + $0x150] sm:$0xff]
    %v136 = vld [vmem:[#allocation5 + $0x158] sm:$0xff]
    %v137 = vld [vmem:[#allocation5 + $0x160] sm:$0xff]
    %v138 = vld [vmem:[#allocation5 + $0x168] sm:$0xff]
    %v139 = vld [vmem:[#allocation5 + $0x170] sm:$0xff]
    %v140 = vld [vmem:[#allocation5 + $0x178] sm:$0xff]
    %v141 = vld [vmem:[#allocation8] sm:$0x7]
    %v143 = vperm.slane %v141, 0
    %v144 = vperm.slane %v141, 1
    %v145 = vperm.slane %v141, 2
    %149 = vmatpush.msra.mxu0 %v138
    %150 = vmatpush.msra.mxu0 %v135
    %151 = vmatpush.msra.mxu0 %v132
    %152 = vmatpush.msra.mxu0 %v129
    %153 = vmatpush.msra.mxu0 %v126
    %154 = vmatpush.msra.mxu0 %v123
    %155 = vmatpush.msra.mxu0 %v120
    %156 = vmatpush.msra.mxu0 %v117
    %157 = vmatpush.msra.mxu0 %v114
    %158 = vmatpush.msra.mxu0 %v111
    %159 = vmatpush.msra.mxu0 %v108
    %160 = vmatpush.msra.mxu0 %v105
    %161 = vmatpush.msra.mxu0 %v102
    %162 = vmatpush.msra.mxu0 %v99
    %163 = vmatpush.msra.mxu0 %v96
    %164 = vmatpush.msra.mxu0 %v93
    %165 = vmatmul.f32.gmra.mxu0 %v85
    %v166 = vpop.f32.mrf.mxu0
    %v167 = vadd.f32 %v143, %v166
    %168 = vmatmul.f32.gmra.mxu0 %v86
    %v169 = vpop.f32.mrf.mxu0
    %v170 = vadd.f32 %v143, %v169
    %171 = vmatmul.f32.gmra.mxu0 %v87
    %v172 = vpop.f32.mrf.mxu0
    %v173 = vadd.f32 %v143, %v172
    %174 = vmatmul.f32.gmra.mxu0 %v88
    %v175 = vpop.f32.mrf.mxu0
    %v176 = vadd.f32 %v143, %v175
    %177 = vmatmul.f32.gmra.mxu0 %v89
    %v178 = vpop.f32.mrf.mxu0
    %v179 = vadd.f32 %v143, %v178
    %180 = vmatmul.f32.gmra.mxu0 %v90
    %v181 = vpop.f32.mrf.mxu0
    %v182 = vadd.f32 %v143, %v181
    %183 = vmatmul.f32.gmra.mxu0 %v91
    %v184 = vpop.f32.mrf.mxu0
    %v185 = vadd.f32 %v143, %v184
    %186 = vmatmul.f32.gmra.mxu0 %v92
    %v187 = vpop.f32.mrf.mxu0
    %v188 = vadd.f32 %v143, %v187
    %189 = vdwg.mxu0
    %190 = vmatpush.msra.mxu0 %v139
    %191 = vmatpush.msra.mxu0 %v136
    %192 = vmatpush.msra.mxu0 %v133
    %193 = vmatpush.msra.mxu0 %v130
    %194 = vmatpush.msra.mxu0 %v127
    %195 = vmatpush.msra.mxu0 %v124
    %196 = vmatpush.msra.mxu0 %v121
    %197 = vmatpush.msra.mxu0 %v118
    %198 = vmatpush.msra.mxu0 %v115
    %199 = vmatpush.msra.mxu0 %v112
    %200 = vmatpush.msra.mxu0 %v109
    %201 = vmatpush.msra.mxu0 %v106
    %202 = vmatpush.msra.mxu0 %v103
    %203 = vmatpush.msra.mxu0 %v100
    %204 = vmatpush.msra.mxu0 %v97
    %205 = vmatpush.msra.mxu0 %v94
    %206 = vmatmul.f32.gmra.mxu0 %v85
    %v207 = vpop.f32.mrf.mxu0
    %v208 = vadd.f32 %v144, %v207
    %209 = vmatmul.f32.gmra.mxu0 %v86
    %v210 = vpop.f32.mrf.mxu0
    %v211 = vadd.f32 %v144, %v210
    %212 = vmatmul.f32.gmra.mxu0 %v87
    %v213 = vpop.f32.mrf.mxu0
    %v214 = vadd.f32 %v144, %v213
    %215 = vmatmul.f32.gmra.mxu0 %v88
    %v216 = vpop.f32.mrf.mxu0
    %v217 = vadd.f32 %v144, %v216
    %218 = vmatmul.f32.gmra.mxu0 %v89
    %v219 = vpop.f32.mrf.mxu0
    %v220 = vadd.f32 %v144, %v219
    %221 = vmatmul.f32.gmra.mxu0 %v90
    %v222 = vpop.f32.mrf.mxu0
    %v223 = vadd.f32 %v144, %v222
    %224 = vmatmul.f32.gmra.mxu0 %v91
    %v225 = vpop.f32.mrf.mxu0
    %v226 = vadd.f32 %v144, %v225
    %227 = vmatmul.f32.gmra.mxu0 %v92
    %v228 = vpop.f32.mrf.mxu0
    %v229 = vadd.f32 %v144, %v228
    %230 = vdwg.mxu0
    %231 = vmatpush.msra.mxu0 %v140
    %232 = vmatpush.msra.mxu0 %v137
    %233 = vmatpush.msra.mxu0 %v134
    %234 = vmatpush.msra.mxu0 %v131
    %235 = vmatpush.msra.mxu0 %v128
    %236 = vmatpush.msra.mxu0 %v125
    %237 = vmatpush.msra.mxu0 %v122
    %238 = vmatpush.msra.mxu0 %v119
    %239 = vmatpush.msra.mxu0 %v116
    %240 = vmatpush.msra.mxu0 %v113
    %241 = vmatpush.msra.mxu0 %v110
    %242 = vmatpush.msra.mxu0 %v107
    %243 = vmatpush.msra.mxu0 %v104
    %244 = vmatpush.msra.mxu0 %v101
    %245 = vmatpush.msra.mxu0 %v98
    %246 = vmatpush.msra.mxu0 %v95
    %247 = vmatmul.f32.gmra.mxu0 %v85
    %v248 = vpop.f32.mrf.mxu0
    %v249 = vadd.f32 %v145, %v248
    %250 = vmatmul.f32.gmra.mxu0 %v86
    %v251 = vpop.f32.mrf.mxu0
    %v252 = vadd.f32 %v145, %v251
    %253 = vmatmul.f32.gmra.mxu0 %v87
    %v254 = vpop.f32.mrf.mxu0
    %v255 = vadd.f32 %v145, %v254
    %256 = vmatmul.f32.gmra.mxu0 %v88
    %v257 = vpop.f32.mrf.mxu0
    %v258 = vadd.f32 %v145, %v257
    %259 = vmatmul.f32.gmra.mxu0 %v89
    %v260 = vpop.f32.mrf.mxu0
    %v261 = vadd.f32 %v145, %v260
    %262 = vmatmul.f32.gmra.mxu0 %v90
    %v263 = vpop.f32.mrf.mxu0
    %v264 = vadd.f32 %v145, %v263
    %265 = vmatmul.f32.gmra.mxu0 %v91
    %v266 = vpop.f32.mrf.mxu0
    %v267 = vadd.f32 %v145, %v266
    %268 = vmatmul.f32.gmra.mxu0 %v92
    %v269 = vpop.f32.mrf.mxu0
    %v270 = vadd.f32 %v145, %v269
    %271 = vdwg.mxu0
    %v272 = vld [vmem:[#allocation7] sm:$0xff]
    %v273 = vld [vmem:[#allocation7 + $0x8] sm:$0xff]
    %v274 = vld [vmem:[#allocation7 + $0x10] sm:$0xff]
    %v275 = vld [vmem:[#allocation7 + $0x18] sm:$0xff]
    %v276 = vld [vmem:[#allocation7 + $0x20] sm:$0xff]
    %v277 = vld [vmem:[#allocation7 + $0x28] sm:$0xff]
    %v278 = vld [vmem:[#allocation7 + $0x30] sm:$0xff]
    %v279 = vld [vmem:[#allocation7 + $0x38] sm:$0xff]
    %v280 = vld [vmem:[#allocation7 + $0x40] sm:$0xff]
    %v281 = vld [vmem:[#allocation7 + $0x48] sm:$0xff]
    %v282 = vld [vmem:[#allocation7 + $0x50] sm:$0xff]
    %v283 = vld [vmem:[#allocation7 + $0x58] sm:$0xff]
    %v284 = vld [vmem:[#allocation7 + $0x60] sm:$0xff]
    %v285 = vld [vmem:[#allocation7 + $0x68] sm:$0xff]
    %v286 = vld [vmem:[#allocation7 + $0x70] sm:$0xff]
    %v287 = vld [vmem:[#allocation7 + $0x78] sm:$0xff]
    %v288 = vld [vmem:[#allocation7 + $0x80] sm:$0xff]
    %v289 = vld [vmem:[#allocation7 + $0x88] sm:$0xff]
    %v290 = vld [vmem:[#allocation7 + $0x90] sm:$0xff]
    %v291 = vld [vmem:[#allocation7 + $0x98] sm:$0xff]
    %v292 = vld [vmem:[#allocation7 + $0xa0] sm:$0xff]
    %v293 = vld [vmem:[#allocation7 + $0xa8] sm:$0xff]
    %v294 = vld [vmem:[#allocation7 + $0xb0] sm:$0xff]
    %v295 = vld [vmem:[#allocation7 + $0xb8] sm:$0xff]
    %v296 = vld [vmem:[#allocation7 + $0xc0] sm:$0xff]
    %v297 = vld [vmem:[#allocation7 + $0xc8] sm:$0xff]
    %v298 = vld [vmem:[#allocation7 + $0xd0] sm:$0xff]
    %v299 = vld [vmem:[#allocation7 + $0xd8] sm:$0xff]
    %v300 = vld [vmem:[#allocation7 + $0xe0] sm:$0xff]
    %v301 = vld [vmem:[#allocation7 + $0xe8] sm:$0xff]
    %v302 = vld [vmem:[#allocation7 + $0xf0] sm:$0xff]
    %v303 = vld [vmem:[#allocation7 + $0xf8] sm:$0xff]
    %v304 = vld [vmem:[#allocation7 + $0x100] sm:$0xff]
    %v305 = vld [vmem:[#allocation7 + $0x108] sm:$0xff]
    %v306 = vld [vmem:[#allocation7 + $0x110] sm:$0xff]
    %v307 = vld [vmem:[#allocation7 + $0x118] sm:$0xff]
    %v308 = vld [vmem:[#allocation7 + $0x120] sm:$0xff]
    %v309 = vld [vmem:[#allocation7 + $0x128] sm:$0xff]
    %v310 = vld [vmem:[#allocation7 + $0x130] sm:$0xff]
    %v311 = vld [vmem:[#allocation7 + $0x138] sm:$0xff]
    %v312 = vld [vmem:[#allocation7 + $0x140] sm:$0xff]
    %v313 = vld [vmem:[#allocation7 + $0x148] sm:$0xff]
    %v314 = vld [vmem:[#allocation7 + $0x150] sm:$0xff]
    %v315 = vld [vmem:[#allocation7 + $0x158] sm:$0xff]
    %v316 = vld [vmem:[#allocation7 + $0x160] sm:$0xff]
    %v317 = vld [vmem:[#allocation7 + $0x168] sm:$0xff]
    %v318 = vld [vmem:[#allocation7 + $0x170] sm:$0xff]
    %v319 = vld [vmem:[#allocation7 + $0x178] sm:$0xff]
    %v320 = vld [vmem:[%s4] sm:$0x1]
    %v322 = vperm.slane %v320, 0
    %324 = vmatpush.msra.mxu0 %v317
    %325 = vmatpush.msra.mxu0 %v314
    %326 = vmatpush.msra.mxu0 %v311
    %327 = vmatpush.msra.mxu0 %v308
    %328 = vmatpush.msra.mxu0 %v305
    %329 = vmatpush.msra.mxu0 %v302
    %330 = vmatpush.msra.mxu0 %v299
    %331 = vmatpush.msra.mxu0 %v296
    %332 = vmatpush.msra.mxu0 %v293
    %333 = vmatpush.msra.mxu0 %v290
    %334 = vmatpush.msra.mxu0 %v287
    %335 = vmatpush.msra.mxu0 %v284
    %336 = vmatpush.msra.mxu0 %v281
    %337 = vmatpush.msra.mxu0 %v278
    %338 = vmatpush.msra.mxu0 %v275
    %339 = vmatpush.msra.mxu0 %v272
    %340 = vmatmul.f32.gmra.mxu0 0.0
    %v341 = vpop.f32.mrf.mxu0
    %v342 = vadd.f32 0.0, %v341
    %343 = vdwg.mxu0
    %344 = vmatpush.msra.mxu0 %v318
    %345 = vmatpush.msra.mxu0 %v315
    %346 = vmatpush.msra.mxu0 %v312
    %347 = vmatpush.msra.mxu0 %v309
    %348 = vmatpush.msra.mxu0 %v306
    %349 = vmatpush.msra.mxu0 %v303
    %350 = vmatpush.msra.mxu0 %v300
    %351 = vmatpush.msra.mxu0 %v297
    %352 = vmatpush.msra.mxu0 %v294
    %353 = vmatpush.msra.mxu0 %v291
    %354 = vmatpush.msra.mxu0 %v288
    %355 = vmatpush.msra.mxu0 %v285
    %356 = vmatpush.msra.mxu0 %v282
    %357 = vmatpush.msra.mxu0 %v279
    %358 = vmatpush.msra.mxu0 %v276
    %359 = vmatpush.msra.mxu0 %v273
    %360 = vmatmul.f32.gmra.mxu0 0.0
    %v361 = vpop.f32.mrf.mxu0
    %v362 = vadd.f32 0.0, %v361
    %363 = vdwg.mxu0
    %364 = vmatpush.msra.mxu0 %v319
    %365 = vmatpush.msra.mxu0 %v316
    %366 = vmatpush.msra.mxu0 %v313
    %367 = vmatpush.msra.mxu0 %v310
    %368 = vmatpush.msra.mxu0 %v307
    %369 = vmatpush.msra.mxu0 %v304
    %370 = vmatpush.msra.mxu0 %v301
    %371 = vmatpush.msra.mxu0 %v298
    %372 = vmatpush.msra.mxu0 %v295
    %373 = vmatpush.msra.mxu0 %v292
    %374 = vmatpush.msra.mxu0 %v289
    %375 = vmatpush.msra.mxu0 %v286
    %376 = vmatpush.msra.mxu0 %v283
    %377 = vmatpush.msra.mxu0 %v280
    %378 = vmatpush.msra.mxu0 %v277
    %379 = vmatpush.msra.mxu0 %v274
    %380 = vmatmul.f32.gmra.mxu0 0.0
    %v381 = vpop.f32.mrf.mxu0
    %v382 = vadd.f32 0.0, %v381
    %383 = vdwg.mxu0
    %v384 = vadd.f32 %v167, %v342
    %v385 = vxor.u32 %v384, 2147483648
    %v386 = vmul.f32 %v385, 1.442695
    %v387 = vpow.pop %v386
    %v388 = vadd.f32 %v387, 1.0
    %v389 = vrcp.pop %v388
    %v390 = vmul.f32 %v388, %v389
    %v391 = vsub.f32 1.0, %v390
    %v392 = vmul.f32 %v389, %v391
    %v393 = vadd.f32 %v389, %v392
    %vm394 = vweird.f32 %v388
    %vm395 = vweird.f32 %v389
    %vm396 = vmor %vm394, %vm395
    %v397 = vsel %vm396, %v389, %v393
    %v398 = vand.u32 2147483647, %v388
    %vm399 = vcmp.eq.f32.partialorder %v398, 8.507059e+37
    %v400 = vand.u32 %v388, 2147483648
    %v401 = vor.u32 1.1754944e-38, %v400
    %v402 = vsel %vm399, %v401, %v397
    %v403 = vmul.f32 1.0, %v402
    %v404 = vadd.f32 %v208, %v362
    %v405 = vxor.u32 %v404, 2147483648
    %v406 = vmul.f32 %v405, 1.442695
    %v407 = vpow.pop %v406
    %v408 = vadd.f32 %v407, 1.0
    %v409 = vrcp.pop %v408
    %v410 = vmul.f32 %v408, %v409
    %v411 = vsub.f32 1.0, %v410
    %v412 = vmul.f32 %v409, %v411
    %v413 = vadd.f32 %v409, %v412
    %vm414 = vweird.f32 %v408
    %vm415 = vweird.f32 %v409
    %vm416 = vmor %vm414, %vm415
    %v417 = vsel %vm416, %v409, %v413
    %v418 = vand.u32 2147483647, %v408
    %vm419 = vcmp.eq.f32.partialorder %v418, 8.507059e+37
    %v420 = vand.u32 %v408, 2147483648
    %v421 = vor.u32 1.1754944e-38, %v420
    %v422 = vsel %vm419, %v421, %v417
    %v423 = vmul.f32 1.0, %v422
    %v424 = vadd.f32 %v382, %v322
    %v425 = vmul.f32 %v403, %v424
    %v426 = vadd.f32 %v249, %v425
    %v427 = vtanh.pop %v426
    %v428 = vsub.f32 1.0, %v423
    %v429 = vmul.f32 %v428, %v427
    %v430 = vmul.f32 %v423, 0.0
    %v431 = vadd.f32 %v429, %v430
    %432 = vst [vmem:[#allocation10] sm:$0xff] %v431
    %433 = vmatpush.msra.mxu0 %v317
    %434 = vmatpush.msra.mxu0 %v314
    %435 = vmatpush.msra.mxu0 %v311
    %436 = vmatpush.msra.mxu0 %v308
    %437 = vmatpush.msra.mxu0 %v305
    %438 = vmatpush.msra.mxu0 %v302
    %439 = vmatpush.msra.mxu0 %v299
    %440 = vmatpush.msra.mxu0 %v296
    %441 = vmatpush.msra.mxu0 %v293
    %442 = vmatpush.msra.mxu0 %v290
    %443 = vmatpush.msra.mxu0 %v287
    %444 = vmatpush.msra.mxu0 %v284
    %445 = vmatpush.msra.mxu0 %v281
    %446 = vmatpush.msra.mxu0 %v278
    %447 = vmatpush.msra.mxu0 %v275
    %448 = vmatpush.msra.mxu0 %v272
    %449 = vmatmul.f32.gmra.mxu0 %v431
    %v450 = vpop.f32.mrf.mxu0
    %v451 = vadd.f32 0.0, %v450
    %452 = vdwg.mxu0
    %453 = vmatpush.msra.mxu0 %v318
    %454 = vmatpush.msra.mxu0 %v315
    %455 = vmatpush.msra.mxu0 %v312
    %456 = vmatpush.msra.mxu0 %v309
    %457 = vmatpush.msra.mxu0 %v306
    %458 = vmatpush.msra.mxu0 %v303
    %459 = vmatpush.msra.mxu0 %v300
    %460 = vmatpush.msra.mxu0 %v297
    %461 = vmatpush.msra.mxu0 %v294
    %462 = vmatpush.msra.mxu0 %v291
    %463 = vmatpush.msra.mxu0 %v288
    %464 = vmatpush.msra.mxu0 %v285
    %465 = vmatpush.msra.mxu0 %v282
    %466 = vmatpush.msra.mxu0 %v279
    %467 = vmatpush.msra.mxu0 %v276
    %468 = vmatpush.msra.mxu0 %v273
    %469 = vmatmul.f32.gmra.mxu0 %v431
    %v470 = vpop.f32.mrf.mxu0
    %v471 = vadd.f32 0.0, %v470
    %472 = vdwg.mxu0
    %473 = vmatpush.msra.mxu0 %v319
    %474 = vmatpush.msra.mxu0 %v316
    %475 = vmatpush.msra.mxu0 %v313
    %476 = vmatpush.msra.mxu0 %v310
    %477 = vmatpush.msra.mxu0 %v307
    %478 = vmatpush.msra.mxu0 %v304
    %479 = vmatpush.msra.mxu0 %v301
    %480 = vmatpush.msra.mxu0 %v298
    %481 = vmatpush.msra.mxu0 %v295
    %482 = vmatpush.msra.mxu0 %v292
    %483 = vmatpush.msra.mxu0 %v289
    %484 = vmatpush.msra.mxu0 %v286
    %485 = vmatpush.msra.mxu0 %v283
    %486 = vmatpush.msra.mxu0 %v280
    %487 = vmatpush.msra.mxu0 %v277
    %488 = vmatpush.msra.mxu0 %v274
    %489 = vmatmul.f32.gmra.mxu0 %v431
    %v490 = vpop.f32.mrf.mxu0
    %v491 = vadd.f32 0.0, %v490
    %492 = vdwg.mxu0
    %v493 = vadd.f32 %v170, %v451
    %v494 = vxor.u32 %v493, 2147483648
    %v495 = vmul.f32 %v494, 1.442695
    %v496 = vpow.pop %v495
    %v497 = vadd.f32 %v496, 1.0
    %v498 = vrcp.pop %v497
    %v499 = vmul.f32 %v497, %v498
    %v500 = vsub.f32 1.0, %v499
    %v501 = vmul.f32 %v498, %v500
    %v502 = vadd.f32 %v498, %v501
    %vm503 = vweird.f32 %v497
    %vm504 = vweird.f32 %v498
    %vm505 = vmor %vm503, %vm504
    %v506 = vsel %vm505, %v498, %v502
    %v507 = vand.u32 2147483647, %v497
    %vm508 = vcmp.eq.f32.partialorder %v507, 8.507059e+37
    %v509 = vand.u32 %v497, 2147483648
    %v510 = vor.u32 1.1754944e-38, %v509
    %v511 = vsel %vm508, %v510, %v506
    %v512 = vmul.f32 1.0, %v511
    %v513 = vadd.f32 %v211, %v471
    %v514 = vxor.u32 %v513, 2147483648
    %v515 = vmul.f32 %v514, 1.442695
    %v516 = vpow.pop %v515
    %v517 = vadd.f32 %v516, 1.0
    %v518 = vrcp.pop %v517
    %v519 = vmul.f32 %v517, %v518
    %v520 = vsub.f32 1.0, %v519
    %v521 = vmul.f32 %v518, %v520
    %v522 = vadd.f32 %v518, %v521
    %vm523 = vweird.f32 %v517
    %vm524 = vweird.f32 %v518
    %vm525 = vmor %vm523, %vm524
    %v526 = vsel %vm525, %v518, %v522
    %v527 = vand.u32 2147483647, %v517
    %vm528 = vcmp.eq.f32.partialorder %v527, 8.507059e+37
    %v529 = vand.u32 %v517, 2147483648
    %v530 = vor.u32 1.1754944e-38, %v529
    %v531 = vsel %vm528, %v530, %v526
    %v532 = vmul.f32 1.0, %v531
    %v533 = vadd.f32 %v491, %v322
    %v534 = vmul.f32 %v512, %v533
    %v535 = vadd.f32 %v252, %v534
    %v536 = vtanh.pop %v535
    %v537 = vsub.f32 1.0, %v532
    %v538 = vmul.f32 %v537, %v536
    %v539 = vmul.f32 %v532, %v431
    %v540 = vadd.f32 %v538, %v539
    %541 = vst [vmem:[#allocation10 + $0x8] sm:$0xff] %v540
    %542 = vmatpush.msra.mxu0 %v317
    %543 = vmatpush.msra.mxu0 %v314
    %544 = vmatpush.msra.mxu0 %v311
    %545 = vmatpush.msra.mxu0 %v308
    %546 = vmatpush.msra.mxu0 %v305
    %547 = vmatpush.msra.mxu0 %v302
    %548 = vmatpush.msra.mxu0 %v299
    %549 = vmatpush.msra.mxu0 %v296
    %550 = vmatpush.msra.mxu0 %v293
    %551 = vmatpush.msra.mxu0 %v290
    %552 = vmatpush.msra.mxu0 %v287
    %553 = vmatpush.msra.mxu0 %v284
    %554 = vmatpush.msra.mxu0 %v281
    %555 = vmatpush.msra.mxu0 %v278
    %556 = vmatpush.msra.mxu0 %v275
    %557 = vmatpush.msra.mxu0 %v272
    %558 = vmatmul.f32.gmra.mxu0 %v540
    %v559 = vpop.f32.mrf.mxu0
    %v560 = vadd.f32 0.0, %v559
    %561 = vdwg.mxu0
    %562 = vmatpush.msra.mxu0 %v318
    %563 = vmatpush.msra.mxu0 %v315
    %564 = vmatpush.msra.mxu0 %v312
    %565 = vmatpush.msra.mxu0 %v309
    %566 = vmatpush.msra.mxu0 %v306
    %567 = vmatpush.msra.mxu0 %v303
    %568 = vmatpush.msra.mxu0 %v300
    %569 = vmatpush.msra.mxu0 %v297
    %570 = vmatpush.msra.mxu0 %v294
    %571 = vmatpush.msra.mxu0 %v291
    %572 = vmatpush.msra.mxu0 %v288
    %573 = vmatpush.msra.mxu0 %v285
    %574 = vmatpush.msra.mxu0 %v282
    %575 = vmatpush.msra.mxu0 %v279
    %576 = vmatpush.msra.mxu0 %v276
    %577 = vmatpush.msra.mxu0 %v273
    %578 = vmatmul.f32.gmra.mxu0 %v540
    %v579 = vpop.f32.mrf.mxu0
    %v580 = vadd.f32 0.0, %v579
    %581 = vdwg.mxu0
    %582 = vmatpush.msra.mxu0 %v319
    %583 = vmatpush.msra.mxu0 %v316
    %584 = vmatpush.msra.mxu0 %v313
    %585 = vmatpush.msra.mxu0 %v310
    %586 = vmatpush.msra.mxu0 %v307
    %587 = vmatpush.msra.mxu0 %v304
    %588 = vmatpush.msra.mxu0 %v301
    %589 = vmatpush.msra.mxu0 %v298
    %590 = vmatpush.msra.mxu0 %v295
    %591 = vmatpush.msra.mxu0 %v292
    %592 = vmatpush.msra.mxu0 %v289
    %593 = vmatpush.msra.mxu0 %v286
    %594 = vmatpush.msra.mxu0 %v283
    %595 = vmatpush.msra.mxu0 %v280
    %596 = vmatpush.msra.mxu0 %v277
    %597 = vmatpush.msra.mxu0 %v274
    %598 = vmatmul.f32.gmra.mxu0 %v540
    %v599 = vpop.f32.mrf.mxu0
    %v600 = vadd.f32 0.0, %v599
    %601 = vdwg.mxu0
    %v602 = vadd.f32 %v173, %v560
    %v603 = vxor.u32 %v602, 2147483648
    %v604 = vmul.f32 %v603, 1.442695
    %v605 = vpow.pop %v604
    %v606 = vadd.f32 %v605, 1.0
    %v607 = vrcp.pop %v606
    %v608 = vmul.f32 %v606, %v607
    %v609 = vsub.f32 1.0, %v608
    %v610 = vmul.f32 %v607, %v609
    %v611 = vadd.f32 %v607, %v610
    %vm612 = vweird.f32 %v606
    %vm613 = vweird.f32 %v607
    %vm614 = vmor %vm612, %vm613
    %v615 = vsel %vm614, %v607, %v611
    %v616 = vand.u32 2147483647, %v606
    %vm617 = vcmp.eq.f32.partialorder %v616, 8.507059e+37
    %v618 = vand.u32 %v606, 2147483648
    %v619 = vor.u32 1.1754944e-38, %v618
    %v620 = vsel %vm617, %v619, %v615
    %v621 = vmul.f32 1.0, %v620
    %v622 = vadd.f32 %v214, %v580
    %v623 = vxor.u32 %v622, 2147483648
    %v624 = vmul.f32 %v623, 1.442695
    %v625 = vpow.pop %v624
    %v626 = vadd.f32 %v625, 1.0
    %v627 = vrcp.pop %v626
    %v628 = vmul.f32 %v626, %v627
    %v629 = vsub.f32 1.0, %v628
    %v630 = vmul.f32 %v627, %v629
    %v631 = vadd.f32 %v627, %v630
    %vm632 = vweird.f32 %v626
    %vm633 = vweird.f32 %v627
    %vm634 = vmor %vm632, %vm633
    %v635 = vsel %vm634, %v627, %v631
    %v636 = vand.u32 2147483647, %v626
    %vm637 = vcmp.eq.f32.partialorder %v636, 8.507059e+37
    %v638 = vand.u32 %v626, 2147483648
    %v639 = vor.u32 1.1754944e-38, %v638
    %v640 = vsel %vm637, %v639, %v635
    %v641 = vmul.f32 1.0, %v640
    %v642 = vadd.f32 %v600, %v322
    %v643 = vmul.f32 %v621, %v642
    %v644 = vadd.f32 %v255, %v643
    %v645 = vtanh.pop %v644
    %v646 = vsub.f32 1.0, %v641
    %v647 = vmul.f32 %v646, %v645
    %v648 = vmul.f32 %v641, %v540
    %v649 = vadd.f32 %v647, %v648
    %650 = vst [vmem:[#allocation10 + $0x10] sm:$0xff] %v649
    %651 = vmatpush.msra.mxu0 %v317
    %652 = vmatpush.msra.mxu0 %v314
    %653 = vmatpush.msra.mxu0 %v311
    %654 = vmatpush.msra.mxu0 %v308
    %655 = vmatpush.msra.mxu0 %v305
    %656 = vmatpush.msra.mxu0 %v302
    %657 = vmatpush.msra.mxu0 %v299
    %658 = vmatpush.msra.mxu0 %v296
    %659 = vmatpush.msra.mxu0 %v293
    %660 = vmatpush.msra.mxu0 %v290
    %661 = vmatpush.msra.mxu0 %v287
    %662 = vmatpush.msra.mxu0 %v284
    %663 = vmatpush.msra.mxu0 %v281
    %664 = vmatpush.msra.mxu0 %v278
    %665 = vmatpush.msra.mxu0 %v275
    %666 = vmatpush.msra.mxu0 %v272
    %667 = vmatmul.f32.gmra.mxu0 %v649
    %v668 = vpop.f32.mrf.mxu0
    %v669 = vadd.f32 0.0, %v668
    %670 = vdwg.mxu0
    %671 = vmatpush.msra.mxu0 %v318
    %672 = vmatpush.msra.mxu0 %v315
    %673 = vmatpush.msra.mxu0 %v312
    %674 = vmatpush.msra.mxu0 %v309
    %675 = vmatpush.msra.mxu0 %v306
    %676 = vmatpush.msra.mxu0 %v303
    %677 = vmatpush.msra.mxu0 %v300
    %678 = vmatpush.msra.mxu0 %v297
    %679 = vmatpush.msra.mxu0 %v294
    %680 = vmatpush.msra.mxu0 %v291
    %681 = vmatpush.msra.mxu0 %v288
    %682 = vmatpush.msra.mxu0 %v285
    %683 = vmatpush.msra.mxu0 %v282
    %684 = vmatpush.msra.mxu0 %v279
    %685 = vmatpush.msra.mxu0 %v276
    %686 = vmatpush.msra.mxu0 %v273
    %687 = vmatmul.f32.gmra.mxu0 %v649
    %v688 = vpop.f32.mrf.mxu0
    %v689 = vadd.f32 0.0, %v688
    %690 = vdwg.mxu0
    %691 = vmatpush.msra.mxu0 %v319
    %692 = vmatpush.msra.mxu0 %v316
    %693 = vmatpush.msra.mxu0 %v313
    %694 = vmatpush.msra.mxu0 %v310
    %695 = vmatpush.msra.mxu0 %v307
    %696 = vmatpush.msra.mxu0 %v304
    %697 = vmatpush.msra.mxu0 %v301
    %698 = vmatpush.msra.mxu0 %v298
    %699 = vmatpush.msra.mxu0 %v295
    %700 = vmatpush.msra.mxu0 %v292
    %701 = vmatpush.msra.mxu0 %v289
    %702 = vmatpush.msra.mxu0 %v286
    %703 = vmatpush.msra.mxu0 %v283
    %704 = vmatpush.msra.mxu0 %v280
    %705 = vmatpush.msra.mxu0 %v277
    %706 = vmatpush.msra.mxu0 %v274
    %707 = vmatmul.f32.gmra.mxu0 %v649
    %v708 = vpop.f32.mrf.mxu0
    %v709 = vadd.f32 0.0, %v708
    %710 = vdwg.mxu0
    %v711 = vadd.f32 %v176, %v669
    %v712 = vxor.u32 %v711, 2147483648
    %v713 = vmul.f32 %v712, 1.442695
    %v714 = vpow.pop %v713
    %v715 = vadd.f32 %v714, 1.0
    %v716 = vrcp.pop %v715
    %v717 = vmul.f32 %v715, %v716
    %v718 = vsub.f32 1.0, %v717
    %v719 = vmul.f32 %v716, %v718
    %v720 = vadd.f32 %v716, %v719
    %vm721 = vweird.f32 %v715
    %vm722 = vweird.f32 %v716
    %vm723 = vmor %vm721, %vm722
    %v724 = vsel %vm723, %v716, %v720
    %v725 = vand.u32 2147483647, %v715
    %vm726 = vcmp.eq.f32.partialorder %v725, 8.507059e+37
    %v727 = vand.u32 %v715, 2147483648
    %v728 = vor.u32 1.1754944e-38, %v727
    %v729 = vsel %vm726, %v728, %v724
    %v730 = vmul.f32 1.0, %v729
    %v731 = vadd.f32 %v217, %v689
    %v732 = vxor.u32 %v731, 2147483648
    %v733 = vmul.f32 %v732, 1.442695
    %v734 = vpow.pop %v733
    %v735 = vadd.f32 %v734, 1.0
    %v736 = vrcp.pop %v735
    %v737 = vmul.f32 %v735, %v736
    %v738 = vsub.f32 1.0, %v737
    %v739 = vmul.f32 %v736, %v738
    %v740 = vadd.f32 %v736, %v739
    %vm741 = vweird.f32 %v735
    %vm742 = vweird.f32 %v736
    %vm743 = vmor %vm741, %vm742
    %v744 = vsel %vm743, %v736, %v740
    %v745 = vand.u32 2147483647, %v735
    %vm746 = vcmp.eq.f32.partialorder %v745, 8.507059e+37
    %v747 = vand.u32 %v735, 2147483648
    %v748 = vor.u32 1.1754944e-38, %v747
    %v749 = vsel %vm746, %v748, %v744
    %v750 = vmul.f32 1.0, %v749
    %v751 = vadd.f32 %v709, %v322
    %v752 = vmul.f32 %v730, %v751
    %v753 = vadd.f32 %v258, %v752
    %v754 = vtanh.pop %v753
    %v755 = vsub.f32 1.0, %v750
    %v756 = vmul.f32 %v755, %v754
    %v757 = vmul.f32 %v750, %v649
    %v758 = vadd.f32 %v756, %v757
    %759 = vst [vmem:[#allocation10 + $0x18] sm:$0xff] %v758
    %760 = vmatpush.msra.mxu0 %v317
    %761 = vmatpush.msra.mxu0 %v314
    %762 = vmatpush.msra.mxu0 %v311
    %763 = vmatpush.msra.mxu0 %v308
    %764 = vmatpush.msra.mxu0 %v305
    %765 = vmatpush.msra.mxu0 %v302
    %766 = vmatpush.msra.mxu0 %v299
    %767 = vmatpush.msra.mxu0 %v296
    %768 = vmatpush.msra.mxu0 %v293
    %769 = vmatpush.msra.mxu0 %v290
    %770 = vmatpush.msra.mxu0 %v287
    %771 = vmatpush.msra.mxu0 %v284
    %772 = vmatpush.msra.mxu0 %v281
    %773 = vmatpush.msra.mxu0 %v278
    %774 = vmatpush.msra.mxu0 %v275
    %775 = vmatpush.msra.mxu0 %v272
    %776 = vmatmul.f32.gmra.mxu0 %v758
    %v777 = vpop.f32.mrf.mxu0
    %v778 = vadd.f32 0.0, %v777
    %779 = vdwg.mxu0
    %780 = vmatpush.msra.mxu0 %v318
    %781 = vmatpush.msra.mxu0 %v315
    %782 = vmatpush.msra.mxu0 %v312
    %783 = vmatpush.msra.mxu0 %v309
    %784 = vmatpush.msra.mxu0 %v306
    %785 = vmatpush.msra.mxu0 %v303
    %786 = vmatpush.msra.mxu0 %v300
    %787 = vmatpush.msra.mxu0 %v297
    %788 = vmatpush.msra.mxu0 %v294
    %789 = vmatpush.msra.mxu0 %v291
    %790 = vmatpush.msra.mxu0 %v288
    %791 = vmatpush.msra.mxu0 %v285
    %792 = vmatpush.msra.mxu0 %v282
    %793 = vmatpush.msra.mxu0 %v279
    %794 = vmatpush.msra.mxu0 %v276
    %795 = vmatpush.msra.mxu0 %v273
    %796 = vmatmul.f32.gmra.mxu0 %v758
    %v797 = vpop.f32.mrf.mxu0
    %v798 = vadd.f32 0.0, %v797
    %799 = vdwg.mxu0
    %800 = vmatpush.msra.mxu0 %v319
    %801 = vmatpush.msra.mxu0 %v316
    %802 = vmatpush.msra.mxu0 %v313
    %803 = vmatpush.msra.mxu0 %v310
    %804 = vmatpush.msra.mxu0 %v307
    %805 = vmatpush.msra.mxu0 %v304
    %806 = vmatpush.msra.mxu0 %v301
    %807 = vmatpush.msra.mxu0 %v298
    %808 = vmatpush.msra.mxu0 %v295
    %809 = vmatpush.msra.mxu0 %v292
    %810 = vmatpush.msra.mxu0 %v289
    %811 = vmatpush.msra.mxu0 %v286
    %812 = vmatpush.msra.mxu0 %v283
    %813 = vmatpush.msra.mxu0 %v280
    %814 = vmatpush.msra.mxu0 %v277
    %815 = vmatpush.msra.mxu0 %v274
    %816 = vmatmul.f32.gmra.mxu0 %v758
    %v817 = vpop.f32.mrf.mxu0
    %v818 = vadd.f32 0.0, %v817
    %819 = vdwg.mxu0
    %v820 = vadd.f32 %v179, %v778
    %v821 = vxor.u32 %v820, 2147483648
    %v822 = vmul.f32 %v821, 1.442695
    %v823 = vpow.pop %v822
    %v824 = vadd.f32 %v823, 1.0
    %v825 = vrcp.pop %v824
    %v826 = vmul.f32 %v824, %v825
    %v827 = vsub.f32 1.0, %v826
    %v828 = vmul.f32 %v825, %v827
    %v829 = vadd.f32 %v825, %v828
    %vm830 = vweird.f32 %v824
    %vm831 = vweird.f32 %v825
    %vm832 = vmor %vm830, %vm831
    %v833 = vsel %vm832, %v825, %v829
    %v834 = vand.u32 2147483647, %v824
    %vm835 = vcmp.eq.f32.partialorder %v834, 8.507059e+37
    %v836 = vand.u32 %v824, 2147483648
    %v837 = vor.u32 1.1754944e-38, %v836
    %v838 = vsel %vm835, %v837, %v833
    %v839 = vmul.f32 1.0, %v838
    %v840 = vadd.f32 %v220, %v798
    %v841 = vxor.u32 %v840, 2147483648
    %v842 = vmul.f32 %v841, 1.442695
    %v843 = vpow.pop %v842
    %v844 = vadd.f32 %v843, 1.0
    %v845 = vrcp.pop %v844
    %v846 = vmul.f32 %v844, %v845
    %v847 = vsub.f32 1.0, %v846
    %v848 = vmul.f32 %v845, %v847
    %v849 = vadd.f32 %v845, %v848
    %vm850 = vweird.f32 %v844
    %vm851 = vweird.f32 %v845
    %vm852 = vmor %vm850, %vm851
    %v853 = vsel %vm852, %v845, %v849
    %v854 = vand.u32 2147483647, %v844
    %vm855 = vcmp.eq.f32.partialorder %v854, 8.507059e+37
    %v856 = vand.u32 %v844, 2147483648
    %v857 = vor.u32 1.1754944e-38, %v856
    %v858 = vsel %vm855, %v857, %v853
    %v859 = vmul.f32 1.0, %v858
    %v860 = vadd.f32 %v818, %v322
    %v861 = vmul.f32 %v839, %v860
    %v862 = vadd.f32 %v261, %v861
    %v863 = vtanh.pop %v862
    %v864 = vsub.f32 1.0, %v859
    %v865 = vmul.f32 %v864, %v863
    %v866 = vmul.f32 %v859, %v758
    %v867 = vadd.f32 %v865, %v866
    %868 = vst [vmem:[#allocation10 + $0x20] sm:$0xff] %v867
    %869 = vmatpush.msra.mxu0 %v317
    %870 = vmatpush.msra.mxu0 %v314
    %871 = vmatpush.msra.mxu0 %v311
    %872 = vmatpush.msra.mxu0 %v308
    %873 = vmatpush.msra.mxu0 %v305
    %874 = vmatpush.msra.mxu0 %v302
    %875 = vmatpush.msra.mxu0 %v299
    %876 = vmatpush.msra.mxu0 %v296
    %877 = vmatpush.msra.mxu0 %v293
    %878 = vmatpush.msra.mxu0 %v290
    %879 = vmatpush.msra.mxu0 %v287
    %880 = vmatpush.msra.mxu0 %v284
    %881 = vmatpush.msra.mxu0 %v281
    %882 = vmatpush.msra.mxu0 %v278
    %883 = vmatpush.msra.mxu0 %v275
    %884 = vmatpush.msra.mxu0 %v272
    %885 = vmatmul.f32.gmra.mxu0 %v867
    %v886 = vpop.f32.mrf.mxu0
    %v887 = vadd.f32 0.0, %v886
    %888 = vdwg.mxu0
    %889 = vmatpush.msra.mxu0 %v318
    %890 = vmatpush.msra.mxu0 %v315
    %891 = vmatpush.msra.mxu0 %v312
    %892 = vmatpush.msra.mxu0 %v309
    %893 = vmatpush.msra.mxu0 %v306
    %894 = vmatpush.msra.mxu0 %v303
    %895 = vmatpush.msra.mxu0 %v300
    %896 = vmatpush.msra.mxu0 %v297
    %897 = vmatpush.msra.mxu0 %v294
    %898 = vmatpush.msra.mxu0 %v291
    %899 = vmatpush.msra.mxu0 %v288
    %900 = vmatpush.msra.mxu0 %v285
    %901 = vmatpush.msra.mxu0 %v282
    %902 = vmatpush.msra.mxu0 %v279
    %903 = vmatpush.msra.mxu0 %v276
    %904 = vmatpush.msra.mxu0 %v273
    %905 = vmatmul.f32.gmra.mxu0 %v867
    %v906 = vpop.f32.mrf.mxu0
    %v907 = vadd.f32 0.0, %v906
    %908 = vdwg.mxu0
    %909 = vmatpush.msra.mxu0 %v319
    %910 = vmatpush.msra.mxu0 %v316
    %911 = vmatpush.msra.mxu0 %v313
    %912 = vmatpush.msra.mxu0 %v310
    %913 = vmatpush.msra.mxu0 %v307
    %914 = vmatpush.msra.mxu0 %v304
    %915 = vmatpush.msra.mxu0 %v301
    %916 = vmatpush.msra.mxu0 %v298
    %917 = vmatpush.msra.mxu0 %v295
    %918 = vmatpush.msra.mxu0 %v292
    %919 = vmatpush.msra.mxu0 %v289
    %920 = vmatpush.msra.mxu0 %v286
    %921 = vmatpush.msra.mxu0 %v283
    %922 = vmatpush.msra.mxu0 %v280
    %923 = vmatpush.msra.mxu0 %v277
    %924 = vmatpush.msra.mxu0 %v274
    %925 = vmatmul.f32.gmra.mxu0 %v867
    %v926 = vpop.f32.mrf.mxu0
    %v927 = vadd.f32 0.0, %v926
    %928 = vdwg.mxu0
    %v929 = vadd.f32 %v182, %v887
    %v930 = vxor.u32 %v929, 2147483648
    %v931 = vmul.f32 %v930, 1.442695
    %v932 = vpow.pop %v931
    %v933 = vadd.f32 %v932, 1.0
    %v934 = vrcp.pop %v933
    %v935 = vmul.f32 %v933, %v934
    %v936 = vsub.f32 1.0, %v935
    %v937 = vmul.f32 %v934, %v936
    %v938 = vadd.f32 %v934, %v937
    %vm939 = vweird.f32 %v933
    %vm940 = vweird.f32 %v934
    %vm941 = vmor %vm939, %vm940
    %v942 = vsel %vm941, %v934, %v938
    %v943 = vand.u32 2147483647, %v933
    %vm944 = vcmp.eq.f32.partialorder %v943, 8.507059e+37
    %v945 = vand.u32 %v933, 2147483648
    %v946 = vor.u32 1.1754944e-38, %v945
    %v947 = vsel %vm944, %v946, %v942
    %v948 = vmul.f32 1.0, %v947
    %v949 = vadd.f32 %v223, %v907
    %v950 = vxor.u32 %v949, 2147483648
    %v951 = vmul.f32 %v950, 1.442695
    %v952 = vpow.pop %v951
    %v953 = vadd.f32 %v952, 1.0
    %v954 = vrcp.pop %v953
    %v955 = vmul.f32 %v953, %v954
    %v956 = vsub.f32 1.0, %v955
    %v957 = vmul.f32 %v954, %v956
    %v958 = vadd.f32 %v954, %v957
    %vm959 = vweird.f32 %v953
    %vm960 = vweird.f32 %v954
    %vm961 = vmor %vm959, %vm960
    %v962 = vsel %vm961, %v954, %v958
    %v963 = vand.u32 2147483647, %v953
    %vm964 = vcmp.eq.f32.partialorder %v963, 8.507059e+37
    %v965 = vand.u32 %v953, 2147483648
    %v966 = vor.u32 1.1754944e-38, %v965
    %v967 = vsel %vm964, %v966, %v962
    %v968 = vmul.f32 1.0, %v967
    %v969 = vadd.f32 %v927, %v322
    %v970 = vmul.f32 %v948, %v969
    %v971 = vadd.f32 %v264, %v970
    %v972 = vtanh.pop %v971
    %v973 = vsub.f32 1.0, %v968
    %v974 = vmul.f32 %v973, %v972
    %v975 = vmul.f32 %v968, %v867
    %v976 = vadd.f32 %v974, %v975
    %977 = vst [vmem:[#allocation10 + $0x28] sm:$0xff] %v976
    %978 = vmatpush.msra.mxu0 %v317
    %979 = vmatpush.msra.mxu0 %v314
    %980 = vmatpush.msra.mxu0 %v311
    %981 = vmatpush.msra.mxu0 %v308
    %982 = vmatpush.msra.mxu0 %v305
    %983 = vmatpush.msra.mxu0 %v302
    %984 = vmatpush.msra.mxu0 %v299
    %985 = vmatpush.msra.mxu0 %v296
    %986 = vmatpush.msra.mxu0 %v293
    %987 = vmatpush.msra.mxu0 %v290
    %988 = vmatpush.msra.mxu0 %v287
    %989 = vmatpush.msra.mxu0 %v284
    %990 = vmatpush.msra.mxu0 %v281
    %991 = vmatpush.msra.mxu0 %v278
    %992 = vmatpush.msra.mxu0 %v275
    %993 = vmatpush.msra.mxu0 %v272
    %994 = vmatmul.f32.gmra.mxu0 %v976
    %v995 = vpop.f32.mrf.mxu0
    %v996 = vadd.f32 0.0, %v995
    %997 = vdwg.mxu0
    %998 = vmatpush.msra.mxu0 %v318
    %999 = vmatpush.msra.mxu0 %v315
    %1000 = vmatpush.msra.mxu0 %v312
    %1001 = vmatpush.msra.mxu0 %v309
    %1002 = vmatpush.msra.mxu0 %v306
    %1003 = vmatpush.msra.mxu0 %v303
    %1004 = vmatpush.msra.mxu0 %v300
    %1005 = vmatpush.msra.mxu0 %v297
    %1006 = vmatpush.msra.mxu0 %v294
    %1007 = vmatpush.msra.mxu0 %v291
    %1008 = vmatpush.msra.mxu0 %v288
    %1009 = vmatpush.msra.mxu0 %v285
    %1010 = vmatpush.msra.mxu0 %v282
    %1011 = vmatpush.msra.mxu0 %v279
    %1012 = vmatpush.msra.mxu0 %v276
    %1013 = vmatpush.msra.mxu0 %v273
    %1014 = vmatmul.f32.gmra.mxu0 %v976
    %v1015 = vpop.f32.mrf.mxu0
    %v1016 = vadd.f32 0.0, %v1015
    %1017 = vdwg.mxu0
    %1018 = vmatpush.msra.mxu0 %v319
    %1019 = vmatpush.msra.mxu0 %v316
    %1020 = vmatpush.msra.mxu0 %v313
    %1021 = vmatpush.msra.mxu0 %v310
    %1022 = vmatpush.msra.mxu0 %v307
    %1023 = vmatpush.msra.mxu0 %v304
    %1024 = vmatpush.msra.mxu0 %v301
    %1025 = vmatpush.msra.mxu0 %v298
    %1026 = vmatpush.msra.mxu0 %v295
    %1027 = vmatpush.msra.mxu0 %v292
    %1028 = vmatpush.msra.mxu0 %v289
    %1029 = vmatpush.msra.mxu0 %v286
    %1030 = vmatpush.msra.mxu0 %v283
    %1031 = vmatpush.msra.mxu0 %v280
    %1032 = vmatpush.msra.mxu0 %v277
    %1033 = vmatpush.msra.mxu0 %v274
    %1034 = vmatmul.f32.gmra.mxu0 %v976
    %v1035 = vpop.f32.mrf.mxu0
    %v1036 = vadd.f32 0.0, %v1035
    %1037 = vdwg.mxu0
    %v1038 = vadd.f32 %v185, %v996
    %v1039 = vxor.u32 %v1038, 2147483648
    %v1040 = vmul.f32 %v1039, 1.442695
    %v1041 = vpow.pop %v1040
    %v1042 = vadd.f32 %v1041, 1.0
    %v1043 = vrcp.pop %v1042
    %v1044 = vmul.f32 %v1042, %v1043
    %v1045 = vsub.f32 1.0, %v1044
    %v1046 = vmul.f32 %v1043, %v1045
    %v1047 = vadd.f32 %v1043, %v1046
    %vm1048 = vweird.f32 %v1042
    %vm1049 = vweird.f32 %v1043
    %vm1050 = vmor %vm1048, %vm1049
    %v1051 = vsel %vm1050, %v1043, %v1047
    %v1052 = vand.u32 2147483647, %v1042
    %vm1053 = vcmp.eq.f32.partialorder %v1052, 8.507059e+37
    %v1054 = vand.u32 %v1042, 2147483648
    %v1055 = vor.u32 1.1754944e-38, %v1054
    %v1056 = vsel %vm1053, %v1055, %v1051
    %v1057 = vmul.f32 1.0, %v1056
    %v1058 = vadd.f32 %v226, %v1016
    %v1059 = vxor.u32 %v1058, 2147483648
    %v1060 = vmul.f32 %v1059, 1.442695
    %v1061 = vpow.pop %v1060
    %v1062 = vadd.f32 %v1061, 1.0
    %v1063 = vrcp.pop %v1062
    %v1064 = vmul.f32 %v1062, %v1063
    %v1065 = vsub.f32 1.0, %v1064
    %v1066 = vmul.f32 %v1063, %v1065
    %v1067 = vadd.f32 %v1063, %v1066
    %vm1068 = vweird.f32 %v1062
    %vm1069 = vweird.f32 %v1063
    %vm1070 = vmor %vm1068, %vm1069
    %v1071 = vsel %vm1070, %v1063, %v1067
    %v1072 = vand.u32 2147483647, %v1062
    %vm1073 = vcmp.eq.f32.partialorder %v1072, 8.507059e+37
    %v1074 = vand.u32 %v1062, 2147483648
    %v1075 = vor.u32 1.1754944e-38, %v1074
    %v1076 = vsel %vm1073, %v1075, %v1071
    %v1077 = vmul.f32 1.0, %v1076
    %v1078 = vadd.f32 %v1036, %v322
    %v1079 = vmul.f32 %v1057, %v1078
    %v1080 = vadd.f32 %v267, %v1079
    %v1081 = vtanh.pop %v1080
    %v1082 = vsub.f32 1.0, %v1077
    %v1083 = vmul.f32 %v1082, %v1081
    %v1084 = vmul.f32 %v1077, %v976
    %v1085 = vadd.f32 %v1083, %v1084
    %1086 = vst [vmem:[#allocation10 + $0x30] sm:$0xff] %v1085
    %1087 = vmatpush.msra.mxu0 %v317
    %1088 = vmatpush.msra.mxu0 %v314
    %1089 = vmatpush.msra.mxu0 %v311
    %1090 = vmatpush.msra.mxu0 %v308
    %1091 = vmatpush.msra.mxu0 %v305
    %1092 = vmatpush.msra.mxu0 %v302
    %1093 = vmatpush.msra.mxu0 %v299
    %1094 = vmatpush.msra.mxu0 %v296
    %1095 = vmatpush.msra.mxu0 %v293
    %1096 = vmatpush.msra.mxu0 %v290
    %1097 = vmatpush.msra.mxu0 %v287
    %1098 = vmatpush.msra.mxu0 %v284
    %1099 = vmatpush.msra.mxu0 %v281
    %1100 = vmatpush.msra.mxu0 %v278
    %1101 = vmatpush.msra.mxu0 %v275
    %1102 = vmatpush.msra.mxu0 %v272
    %1103 = vmatmul.f32.gmra.mxu0 %v1085
    %v1104 = vpop.f32.mrf.mxu0
    %v1105 = vadd.f32 0.0, %v1104
    %1106 = vdwg.mxu0
    %1107 = vmatpush.msra.mxu0 %v318
    %1108 = vmatpush.msra.mxu0 %v315
    %1109 = vmatpush.msra.mxu0 %v312
    %1110 = vmatpush.msra.mxu0 %v309
    %1111 = vmatpush.msra.mxu0 %v306
    %1112 = vmatpush.msra.mxu0 %v303
    %1113 = vmatpush.msra.mxu0 %v300
    %1114 = vmatpush.msra.mxu0 %v297
    %1115 = vmatpush.msra.mxu0 %v294
    %1116 = vmatpush.msra.mxu0 %v291
    %1117 = vmatpush.msra.mxu0 %v288
    %1118 = vmatpush.msra.mxu0 %v285
    %1119 = vmatpush.msra.mxu0 %v282
    %1120 = vmatpush.msra.mxu0 %v279
    %1121 = vmatpush.msra.mxu0 %v276
    %1122 = vmatpush.msra.mxu0 %v273
    %1123 = vmatmul.f32.gmra.mxu0 %v1085
    %v1124 = vpop.f32.mrf.mxu0
    %v1125 = vadd.f32 0.0, %v1124
    %1126 = vdwg.mxu0
    %1127 = vmatpush.msra.mxu0 %v319
    %1128 = vmatpush.msra.mxu0 %v316
    %1129 = vmatpush.msra.mxu0 %v313
    %1130 = vmatpush.msra.mxu0 %v310
    %1131 = vmatpush.msra.mxu0 %v307
    %1132 = vmatpush.msra.mxu0 %v304
    %1133 = vmatpush.msra.mxu0 %v301
    %1134 = vmatpush.msra.mxu0 %v298
    %1135 = vmatpush.msra.mxu0 %v295
    %1136 = vmatpush.msra.mxu0 %v292
    %1137 = vmatpush.msra.mxu0 %v289
    %1138 = vmatpush.msra.mxu0 %v286
    %1139 = vmatpush.msra.mxu0 %v283
    %1140 = vmatpush.msra.mxu0 %v280
    %1141 = vmatpush.msra.mxu0 %v277
    %1142 = vmatpush.msra.mxu0 %v274
    %1143 = vmatmul.f32.gmra.mxu0 %v1085
    %v1144 = vpop.f32.mrf.mxu0
    %v1145 = vadd.f32 0.0, %v1144
    %1146 = vdwg.mxu0
    %v1147 = vadd.f32 %v188, %v1105
    %v1148 = vxor.u32 %v1147, 2147483648
    %v1149 = vmul.f32 %v1148, 1.442695
    %v1150 = vpow.pop %v1149
    %v1151 = vadd.f32 %v1150, 1.0
    %v1152 = vrcp.pop %v1151
    %v1153 = vmul.f32 %v1151, %v1152
    %v1154 = vsub.f32 1.0, %v1153
    %v1155 = vmul.f32 %v1152, %v1154
    %v1156 = vadd.f32 %v1152, %v1155
    %vm1157 = vweird.f32 %v1151
    %vm1158 = vweird.f32 %v1152
    %vm1159 = vmor %vm1157, %vm1158
    %v1160 = vsel %vm1159, %v1152, %v1156
    %v1161 = vand.u32 2147483647, %v1151
    %vm1162 = vcmp.eq.f32.partialorder %v1161, 8.507059e+37
    %v1163 = vand.u32 %v1151, 2147483648
    %v1164 = vor.u32 1.1754944e-38, %v1163
    %v1165 = vsel %vm1162, %v1164, %v1160
    %v1166 = vmul.f32 1.0, %v1165
    %v1167 = vadd.f32 %v229, %v1125
    %v1168 = vxor.u32 %v1167, 2147483648
    %v1169 = vmul.f32 %v1168, 1.442695
    %v1170 = vpow.pop %v1169
    %v1171 = vadd.f32 %v1170, 1.0
    %v1172 = vrcp.pop %v1171
    %v1173 = vmul.f32 %v1171, %v1172
    %v1174 = vsub.f32 1.0, %v1173
    %v1175 = vmul.f32 %v1172, %v1174
    %v1176 = vadd.f32 %v1172, %v1175
    %vm1177 = vweird.f32 %v1171
    %vm1178 = vweird.f32 %v1172
    %vm1179 = vmor %vm1177, %vm1178
    %v1180 = vsel %vm1179, %v1172, %v1176
    %v1181 = vand.u32 2147483647, %v1171
    %vm1182 = vcmp.eq.f32.partialorder %v1181, 8.507059e+37
    %v1183 = vand.u32 %v1171, 2147483648
    %v1184 = vor.u32 1.1754944e-38, %v1183
    %v1185 = vsel %vm1182, %v1184, %v1180
    %v1186 = vmul.f32 1.0, %v1185
    %v1187 = vadd.f32 %v1145, %v322
    %v1188 = vmul.f32 %v1166, %v1187
    %v1189 = vadd.f32 %v270, %v1188
    %v1190 = vtanh.pop %v1189
    %v1191 = vsub.f32 1.0, %v1186
    %v1192 = vmul.f32 %v1191, %v1190
    %v1193 = vmul.f32 %v1186, %v1085
    %v1194 = vadd.f32 %v1192, %v1193
    %1195 = vst [vmem:[#allocation10 + $0x38] sm:$0xff] %v1194
    %1196 = vst [vmem:[#allocation11] sm:$0xff] %v1194
    // Predicated region
    $region38: #{tpu_custom_call.1} parent=1 // pred_check
      _
    $region39: #{tpu_custom_call.1} parent=1 // pred_check_branch
      %1198 = sbr.rel (0) target = $region41
    $region40: #{tpu_custom_call.1} parent=1 // pred_region
      %1200 = vsyncadd [#allocation4], 0
      %s1201 = sshll.u32 [#allocation10], 4
      %s1202 = int_to_ptr.vmem [resolvable:$true] %s1201
      %s1203 = sshll.u32 %s5, 4
      %s1204 = int_to_ptr.hbm [resolvable:$true] %s1203
      %1209 = dma.vmem_to_hbm [thread:$0]  %s1202, 1024, %s1204, [#allocation4], 128, 128, 8
    $region41: #{tpu_custom_call.1} parent=1 // pred_fallthru
      _
    // Predicated region
    $region42: #{tpu_custom_call.1} parent=1 // pred_check
      _
    $region43: #{tpu_custom_call.1} parent=1 // pred_check_branch
      %1211 = sbr.rel (0) target = $region45
    $region44: #{tpu_custom_call.1} parent=1 // pred_region
      %1213 = vsyncadd [#allocation12], 0
      %s1215 = sshll.u32 [#allocation11], 4
      %s1216 = int_to_ptr.vmem [resolvable:$true] %s1215
      %s1217 = sshll.u32 %s6, 4
      %s1218 = int_to_ptr.hbm [resolvable:$true] %s1217
      %1220 = dma.vmem_to_hbm [thread:$0]  %s1216, 128, %s1218, [#allocation12]
    $region45: #{tpu_custom_call.1} parent=1 // pred_fallthru
      _
    // Predicated region
    $region46: #{tpu_custom_call.1} parent=1 // pred_check
      _
    $region47: #{tpu_custom_call.1} parent=1 // pred_check_branch
      %1222 = sbr.rel (0) target = $region49
    $region48: #{tpu_custom_call.1} parent=1 // pred_region
      %1224 = dma.done [#allocation4], 1024
    $region49: #{tpu_custom_call.1} parent=1 // pred_fallthru
      _
    // Predicated region
    $region50: #{tpu_custom_call.1} parent=1 // pred_check
      _
    $region51: #{tpu_custom_call.1} parent=1 // pred_check_branch
      %1226 = sbr.rel (0) target = $region53
    $region52: #{tpu_custom_call.1} parent=1 // pred_region
      %1228 = dma.done [#allocation12], 128
    $region53: #{tpu_custom_call.1} parent=1 // pred_fallthru
      _
    %1229 = vsyncpa [#allocation3], 1
    %1230 = vsyncpa [#allocation6], 1
    %1231 = vsyncpa [#allocation9], 1
    %1232 = vsyncpa [#allocation4], 1
    %1233 = vsyncpa [#allocation12], 1

</llo_original>
